<compile_context>
chip_gen: v7x
topology: tpu7x:2x2x1
jax: 0.10.0
libtpu: 0.0.40
codegen_flags: <defaults>
</compile_context>

<pallas_src>
import functools

import jax
import jax.numpy as jnp
import numpy as np
from jax.experimental import pallas as pl
from jax.experimental.pallas import tpu as pltpu

# ----------------------------- model hyper-params -----------------------------
BATCH = 2
SEQ = 8
INPUT_SIZE = 16
HIDDEN = 32
NUM_LAYERS = 2      # kernel is written for exactly 2 stacked LSTM layers
NUM_CLASSES = 4


# --------------------------- parameter slab layout -----------------------------
def _param_layout(D, H):
    """Row offsets (all 8-aligned) of each parameter inside the [rows, 8H] slab."""
    off = {}
    r = 0

    def add(name, nrows):
        nonlocal r
        off[name] = r
        r = ((r + nrows + 7) // 8) * 8

    add("whh", 2 * H)      # fused recurrent RHS [[Whh0|Wih1],[0|Whh1]]  (2H, 8H)
    add("wih0", D)         # layer-0 input projection                     (D, 4H)
    add("b0", 1)           # layer-0 bias (b_ih + b_hh)                   (1, 4H)
    add("b1", 1)           # layer-1 bias                                 (1, 4H)
    add("attn", 1)         # attention vector                             (1, H)
    add("w1", H)           # MLP                                          (H, H/2)
    add("bm1", 1)
    add("w2", H // 2)      #                                              (H/2, H/4)
    add("bm2", 1)
    add("w3", H // 4)      #                                              (H/4, C)
    add("bm3", 1)
    return off, r


def pack_params(p):
    """Coalesce every parameter into one f32 [rows, 8H] slab (one DMA at kernel launch)."""
    D = p["wih0"].shape[0]
    H = p["whh0"].shape[0]
    off, rows = _param_layout(D, H)
    H8 = 8 * H

    top = jnp.concatenate([p["whh0"], p["wih1"]], axis=1)                         # [H, 8H]
    bot = jnp.concatenate([jnp.zeros((H, 4 * H), jnp.float32), p["whh1"]], axis=1)
    entries = {
        "whh": jnp.concatenate([top, bot], axis=0),                               # [2H, 8H]
        "wih0": p["wih0"], "b0": p["b0"], "b1": p["b1"], "attn": p["attn"],
        "w1": p["w1"], "bm1": p["bm1"], "w2": p["w2"], "bm2": p["bm2"],
        "w3": p["w3"], "bm3": p["bm3"],
    }
    slab = jnp.zeros((rows, H8), jnp.float32)
    for name, arr in entries.items():
        slab = jax.lax.dynamic_update_slice(slab, arr.astype(jnp.float32),
                                            (off[name], 0))
    return slab


# --------------------------------- kernel -------------------------------------
def lstm_attn_kernel(x_ref, slab_ref, out_ref, *, B, T, D, H, C, off):
    Hh, Hq = H // 2, H // 4
    H4, H8 = 4 * H, 8 * H

    def param(name, nrows, ncols):
        r0 = off[name]
        # full-lane load, then lane-slice the value (one-time, off the serial chain)
        return slab_ref[r0:r0 + nrows, :][:, 0:ncols]

    # ---- one-time parameter loads (single resident slab) -----------------------
    whh_fused = slab_ref[off["whh"]:off["whh"] + 2 * H, :]      # [2H, 8H]
    wih0 = param("wih0", D, H4)                                 # [D, 4H]
    b0 = param("b0", 1, H4)                                     # [1, 4H]
    b1 = param("b1", 1, H4)                                     # [1, 4H]
    attn = param("attn", 1, H)                                  # [1, H]

    # ---- hoisted layer-0 input projection (dense, off the recurrence chain) ----
    xproj = jnp.dot(x_ref[...], wih0, preferred_element_type=jnp.float32) + b0
    xp = [xproj[t * B:(t + 1) * B, :] for t in range(T)]        # per-step [B, 4H]

    def lstm_update(gates, c):
        # PyTorch gate order i, f, g, o; two full-vreg transcendentals + lane slices.
        sig = jax.nn.sigmoid(gates)                             # [B, 4H]
        tnh = jnp.tanh(gates)                                   # [B, 4H]
        i_g = sig[:, 0 * H:1 * H]
        f_g = sig[:, 1 * H:2 * H]
        g_g = tnh[:, 2 * H:3 * H]
        o_g = sig[:, 3 * H:4 * H]
        c_new = f_g * c + i_g * g_g
        h_new = o_g * jnp.tanh(c_new)
        return h_new, c_new

    zeros = jnp.zeros((B, H), jnp.float32)
    h0, c0 = zeros, zeros
    h1, c1 = zeros, zeros
    h1_seq = []

    # ---- wave-front recurrence: wave w = layer-0 step w + layer-1 step w-1 ------
    for w in range(T + 1):                                      # fully unrolled
        if w == 0:
            # h0_{-1} == 0 -> recurrent matmul contributes nothing at the first step.
            h0, c0 = lstm_update(xp[0], c0)
            continue
        lhs = jnp.concatenate([h0, h1], axis=1)                 # [B, 2H]
        fused = jnp.dot(lhs, whh_fused,
                        preferred_element_type=jnp.float32)     # [B, 8H]
        gates1 = fused[:, H4:H8] + b1                           # layer-1 step w-1
        if w < T:
            h0, c0 = lstm_update(fused[:, 0:H4] + xp[w], c0)    # layer-0 step w
        h1, c1 = lstm_update(gates1, c1)
        h1_seq.append(h1)

    # ---- attention over the T layer-1 states (2-D vreg tail, no scratch) --------
    scores = [jnp.sum(jnp.tanh(h) * attn, axis=-1, keepdims=True) for h in h1_seq]
    m = scores[0]
    for s in scores[1:]:
        m = jnp.maximum(m, s)
    exps = [jnp.exp(s - m) for s in scores]                     # [B, 1] each
    denom = exps[0]
    ctx = h1_seq[0] * exps[0]
    for h, e in zip(h1_seq[1:], exps[1:]):
        denom = denom + e
        ctx = ctx + h * e
    context = ctx / denom                                       # softmax-weighted sum

    # ---- MLP head (Dropout = identity in eval mode) -----------------------------
    w1 = param("w1", H, Hh)
    bm1 = param("bm1", 1, Hh)
    w2 = param("w2", Hh, Hq)
    bm2 = param("bm2", 1, Hq)
    w3 = param("w3", Hq, C)
    bm3 = param("bm3", 1, C)
    a1 = jnp.maximum(
        jnp.dot(context, w1, preferred_element_type=jnp.float32) + bm1, 0.0)
    a2 = jnp.maximum(
        jnp.dot(a1, w2, preferred_element_type=jnp.float32) + bm2, 0.0)
    out_ref[...] = jnp.dot(a2, w3, preferred_element_type=jnp.float32) + bm3


# -------------------------------- wrapper -------------------------------------
@functools.partial(jax.jit, static_argnames=("num_classes",))
def lstm_attention_predictor(x, slab, num_classes=NUM_CLASSES):
    B, T, D = x.shape
    H = slab.shape[1] // 8
    off, _ = _param_layout(D, H)
    # time-major flattened input: row t*B + b
    x_flat = jnp.transpose(x, (1, 0, 2)).reshape(T * B, D)

    kernel = functools.partial(lstm_attn_kernel, B=B, T=T, D=D, H=H,
                               C=num_classes, off=off)
    vmem = pl.BlockSpec(memory_space=pltpu.MemorySpace.VMEM)
    return pl.pallas_call(
        kernel,
        out_shape=jax.ShapeDtypeStruct((B, num_classes), jnp.float32),
        in_specs=[vmem, vmem],          # exactly two input DMAs: x + packed params
        out_specs=vmem,
    )(x_flat, slab)
    # TODO(synk): if this is ever batched over many independent requests, add a
    # leading grid axis with dimension_semantics=("parallel",) to occupy both v7x TCs.


# --------------------------- deterministic params ------------------------------
def init_params(key, input_size, hidden, num_classes):
    ks = jax.random.split(key, 16)
    s_lstm = 1.0 / np.sqrt(hidden)

    def uni(k, shape, scale):
        return jax.random.uniform(k, shape, jnp.float32, -scale, scale)

    h2, h4 = hidden // 2, hidden // 4
    xavier = np.sqrt(6.0 / (1.0 + hidden))
    return {
        # LSTM layer 0 (weights stored transposed: [in, 4H], gate order i,f,g,o)
        "wih0": uni(ks[0], (input_size, 4 * hidden), s_lstm),
        "whh0": uni(ks[1], (hidden, 4 * hidden), s_lstm),
        "b0":   uni(ks[2], (1, 4 * hidden), s_lstm) + uni(ks[3], (1, 4 * hidden), s_lstm),
        # LSTM layer 1
        "wih1": uni(ks[4], (hidden, 4 * hidden), s_lstm),
        "whh1": uni(ks[5], (hidden, 4 * hidden), s_lstm),
        "b1":   uni(ks[6], (1, 4 * hidden), s_lstm) + uni(ks[7], (1, 4 * hidden), s_lstm),
        # attention vector (xavier_uniform on (1, H))
        "attn": uni(ks[8], (1, hidden), xavier),
        # MLP head
        "w1": uni(ks[9], (hidden, h2), 1.0 / np.sqrt(hidden)),
        "bm1": uni(ks[10], (1, h2), 1.0 / np.sqrt(hidden)),
        "w2": uni(ks[11], (h2, h4), 1.0 / np.sqrt(h2)),
        "bm2": uni(ks[12], (1, h4), 1.0 / np.sqrt(h2)),
        "w3": uni(ks[13], (h4, num_classes), 1.0 / np.sqrt(h4)),
        "bm3": uni(ks[14], (1, num_classes), 1.0 / np.sqrt(h4)),
    }


# ------------------------------ pure-JAX reference ------------------------------
def reference_forward(x, p):
    B, T, D = x.shape
    H = p["whh0"].shape[0]

    def run_layer(inp, wih, whh, b):
        def step(carry, xt):
            h, c = carry
            g = xt @ wih + h @ whh + b
            i = jax.nn.sigmoid(g[:, :H])
            f = jax.nn.sigmoid(g[:, H:2 * H])
            gg = jnp.tanh(g[:, 2 * H:3 * H])
            o = jax.nn.sigmoid(g[:, 3 * H:])
            c = f * c + i * gg
            h = o * jnp.tanh(c)
            return (h, c), h
        init = (jnp.zeros((B, H)), jnp.zeros((B, H)))
        _, hs = jax.lax.scan(step, init, jnp.transpose(inp, (1, 0, 2)))
        return jnp.transpose(hs, (1, 0, 2))  # [B, T, H]

    out0 = run_layer(x, p["wih0"], p["whh0"], p["b0"])
    out1 = run_layer(out0, p["wih1"], p["whh1"], p["b1"])
    energy = jnp.tanh(out1)
    scores = jnp.einsum("bth,h->bt", energy, p["attn"][0])
    w = jax.nn.softmax(scores, axis=1)[:, :, None]
    context = jnp.sum(out1 * w, axis=1)
    h1 = jax.nn.relu(context @ p["w1"] + p["bm1"])
    h2 = jax.nn.relu(h1 @ p["w2"] + p["bm2"])
    return h2 @ p["w3"] + p["bm3"]


# ----------------------------------- main --------------------------------------
if __name__ == "__main__":
    key = jax.random.PRNGKey(0)
    kx, kp = jax.random.split(key)
    x = jax.random.normal(kx, (BATCH, SEQ, INPUT_SIZE), jnp.float32)
    params = init_params(kp, INPUT_SIZE, HIDDEN, NUM_CLASSES)
    slab = pack_params(params)          # one-time parameter packing (one coalesced DMA)

    out = lstm_attention_predictor(x, slab)
    out = jax.block_until_ready(out)

    ref = reference_forward(x, params)
    np.testing.assert_allclose(np.asarray(out), np.asarray(ref), rtol=1e-5, atol=1e-5)

    print("KERNEL_OK")
</pallas_src>

<mosaic_0001>
module attributes {stable_mosaic.version = 11 : i64} {
  func.func @lstm_attn_kernel(%arg0: memref<16x16xf32, #tpu.memory_space<vmem>>, %arg1: memref<184x256xf32, #tpu.memory_space<vmem>>, %arg2: memref<2x4xf32, #tpu.memory_space<vmem>>) attributes {dimension_semantics = [], scalar_prefetch = 0 : i64, scratch_operands = 0 : i64, tpu.core_type = #tpu.core_type<tc>} {
    %c0 = arith.constant 0 : index
    %c0_0 = arith.constant 0 : index
    %0 = vector.load %arg1[%c0, %c0_0] : memref<184x256xf32, #tpu.memory_space<vmem>>, vector<64x256xf32>
    %c64 = arith.constant 64 : index
    %c0_1 = arith.constant 0 : index
    %1 = vector.load %arg1[%c64, %c0_1] : memref<184x256xf32, #tpu.memory_space<vmem>>, vector<16x256xf32>
    %2 = vector.extract_strided_slice %1 {offsets = [0, 0], sizes = [16, 128], strides = [1, 1]} : vector<16x256xf32> to vector<16x128xf32>
    %c80 = arith.constant 80 : index
    %c0_2 = arith.constant 0 : index
    %3 = vector.load %arg1[%c80, %c0_2] : memref<184x256xf32, #tpu.memory_space<vmem>>, vector<1x256xf32>
    %4 = vector.extract_strided_slice %3 {offsets = [0, 0], sizes = [1, 128], strides = [1, 1]} : vector<1x256xf32> to vector<1x128xf32>
    %c88 = arith.constant 88 : index
    %c0_3 = arith.constant 0 : index
    %5 = vector.load %arg1[%c88, %c0_3] : memref<184x256xf32, #tpu.memory_space<vmem>>, vector<1x256xf32>
    %6 = vector.extract_strided_slice %5 {offsets = [0, 0], sizes = [1, 128], strides = [1, 1]} : vector<1x256xf32> to vector<1x128xf32>
    %c96 = arith.constant 96 : index
    %c0_4 = arith.constant 0 : index
    %7 = vector.load %arg1[%c96, %c0_4] : memref<184x256xf32, #tpu.memory_space<vmem>>, vector<1x256xf32>
    %8 = vector.extract_strided_slice %7 {offsets = [0, 0], sizes = [1, 32], strides = [1, 1]} : vector<1x256xf32> to vector<1x32xf32>
    %c0_5 = arith.constant 0 : index
    %c0_6 = arith.constant 0 : index
    %9 = vector.load %arg0[%c0_5, %c0_6] : memref<16x16xf32, #tpu.memory_space<vmem>>, vector<16x16xf32>
    %cst = arith.constant dense<0.000000e+00> : vector<16x128xf32>
    %10 = tpu.matmul %9, %2, %cst {dimension_numbers = #tpu.dot_dimension_numbers<[1], [0], [0], [1], [0, 0, 1, 1], [], []>} : vector<16x16xf32>, vector<16x128xf32>, vector<16x128xf32> -> vector<16x128xf32>
    %11 = vector.broadcast %4 : vector<1x128xf32> to vector<16x128xf32>
    %12 = arith.addf %10, %11 : vector<16x128xf32>
    %13 = vector.extract_strided_slice %12 {offsets = [0, 0], sizes = [2, 128], strides = [1, 1]} : vector<16x128xf32> to vector<2x128xf32>
    %14 = vector.extract_strided_slice %12 {offsets = [2, 0], sizes = [2, 128], strides = [1, 1]} : vector<16x128xf32> to vector<2x128xf32>
    %15 = vector.extract_strided_slice %12 {offsets = [4, 0], sizes = [2, 128], strides = [1, 1]} : vector<16x128xf32> to vector<2x128xf32>
    %16 = vector.extract_strided_slice %12 {offsets = [6, 0], sizes = [2, 128], strides = [1, 1]} : vector<16x128xf32> to vector<2x128xf32>
    %17 = vector.extract_strided_slice %12 {offsets = [8, 0], sizes = [2, 128], strides = [1, 1]} : vector<16x128xf32> to vector<2x128xf32>
    %18 = vector.extract_strided_slice %12 {offsets = [10, 0], sizes = [2, 128], strides = [1, 1]} : vector<16x128xf32> to vector<2x128xf32>
    %19 = vector.extract_strided_slice %12 {offsets = [12, 0], sizes = [2, 128], strides = [1, 1]} : vector<16x128xf32> to vector<2x128xf32>
    %20 = vector.extract_strided_slice %12 {offsets = [14, 0], sizes = [2, 128], strides = [1, 1]} : vector<16x128xf32> to vector<2x128xf32>
    %cst_7 = arith.constant 0.000000e+00 : f32
    %21 = vector.broadcast %cst_7 : f32 to vector<2x32xf32>
    %22 = arith.negf %13 : vector<2x128xf32>
    %23 = math.exp %22 : vector<2x128xf32>
    %cst_8 = arith.constant 1.000000e+00 : f32
    %24 = vector.broadcast %cst_8 : f32 to vector<2x128xf32>
    %25 = arith.addf %24, %23 : vector<2x128xf32>
    %26 = arith.divf %24, %25 : vector<2x128xf32>
    %27 = math.tanh %13 : vector<2x128xf32>
    %28 = vector.extract_strided_slice %26 {offsets = [0, 0], sizes = [2, 32], strides = [1, 1]} : vector<2x128xf32> to vector<2x32xf32>
    %29 = vector.extract_strided_slice %26 {offsets = [0, 32], sizes = [2, 32], strides = [1, 1]} : vector<2x128xf32> to vector<2x32xf32>
    %30 = vector.extract_strided_slice %27 {offsets = [0, 64], sizes = [2, 32], strides = [1, 1]} : vector<2x128xf32> to vector<2x32xf32>
    %31 = vector.extract_strided_slice %26 {offsets = [0, 96], sizes = [2, 32], strides = [1, 1]} : vector<2x128xf32> to vector<2x32xf32>
    %32 = arith.mulf %29, %21 : vector<2x32xf32>
    %33 = arith.mulf %28, %30 : vector<2x32xf32>
    %34 = arith.addf %32, %33 : vector<2x32xf32>
    %35 = math.tanh %34 : vector<2x32xf32>
    %36 = arith.mulf %31, %35 : vector<2x32xf32>
    %37 = tpu.concatenate %36, %21 in 1 : vector<2x32xf32>, vector<2x32xf32> -> vector<2x64xf32>
    %cst_9 = arith.constant dense<0.000000e+00> : vector<2x256xf32>
    %38 = tpu.matmul %37, %0, %cst_9 {dimension_numbers = #tpu.dot_dimension_numbers<[1], [0], [0], [1], [0, 0, 1, 1], [], []>} : vector<2x64xf32>, vector<64x256xf32>, vector<2x256xf32> -> vector<2x256xf32>
    %39 = vector.extract_strided_slice %38 {offsets = [0, 128], sizes = [2, 128], strides = [1, 1]} : vector<2x256xf32> to vector<2x128xf32>
    %40 = vector.broadcast %6 : vector<1x128xf32> to vector<2x128xf32>
    %41 = arith.addf %39, %40 : vector<2x128xf32>
    %42 = vector.extract_strided_slice %38 {offsets = [0, 0], sizes = [2, 128], strides = [1, 1]} : vector<2x256xf32> to vector<2x128xf32>
    %43 = arith.addf %42, %14 : vector<2x128xf32>
    %44 = arith.negf %43 : vector<2x128xf32>
    %45 = math.exp %44 : vector<2x128xf32>
    %cst_10 = arith.constant 1.000000e+00 : f32
    %46 = vector.broadcast %cst_10 : f32 to vector<2x128xf32>
    %47 = arith.addf %46, %45 : vector<2x128xf32>
    %48 = arith.divf %46, %47 : vector<2x128xf32>
    %49 = math.tanh %43 : vector<2x128xf32>
    %50 = vector.extract_strided_slice %48 {offsets = [0, 0], sizes = [2, 32], strides = [1, 1]} : vector<2x128xf32> to vector<2x32xf32>
    %51 = vector.extract_strided_slice %48 {offsets = [0, 32], sizes = [2, 32], strides = [1, 1]} : vector<2x128xf32> to vector<2x32xf32>
    %52 = vector.extract_strided_slice %49 {offsets = [0, 64], sizes = [2, 32], strides = [1, 1]} : vector<2x128xf32> to vector<2x32xf32>
    %53 = vector.extract_strided_slice %48 {offsets = [0, 96], sizes = [2, 32], strides = [1, 1]} : vector<2x128xf32> to vector<2x32xf32>
    %54 = arith.mulf %51, %34 : vector<2x32xf32>
    %55 = arith.mulf %50, %52 : vector<2x32xf32>
    %56 = arith.addf %54, %55 : vector<2x32xf32>
    %57 = math.tanh %56 : vector<2x32xf32>
    %58 = arith.mulf %53, %57 : vector<2x32xf32>
    %59 = arith.negf %41 : vector<2x128xf32>
    %60 = math.exp %59 : vector<2x128xf32>
    %cst_11 = arith.constant 1.000000e+00 : f32
    %61 = vector.broadcast %cst_11 : f32 to vector<2x128xf32>
    %62 = arith.addf %61, %60 : vector<2x128xf32>
    %63 = arith.divf %61, %62 : vector<2x128xf32>
    %64 = math.tanh %41 : vector<2x128xf32>
    %65 = vector.extract_strided_slice %63 {offsets = [0, 0], sizes = [2, 32], strides = [1, 1]} : vector<2x128xf32> to vector<2x32xf32>
    %66 = vector.extract_strided_slice %63 {offsets = [0, 32], sizes = [2, 32], strides = [1, 1]} : vector<2x128xf32> to vector<2x32xf32>
    %67 = vector.extract_strided_slice %64 {offsets = [0, 64], sizes = [2, 32], strides = [1, 1]} : vector<2x128xf32> to vector<2x32xf32>
    %68 = vector.extract_strided_slice %63 {offsets = [0, 96], sizes = [2, 32], strides = [1, 1]} : vector<2x128xf32> to vector<2x32xf32>
    %69 = arith.mulf %66, %21 : vector<2x32xf32>
    %70 = arith.mulf %65, %67 : vector<2x32xf32>
    %71 = arith.addf %69, %70 : vector<2x32xf32>
    %72 = math.tanh %71 : vector<2x32xf32>
    %73 = arith.mulf %68, %72 : vector<2x32xf32>
    %74 = tpu.concatenate %58, %73 in 1 : vector<2x32xf32>, vector<2x32xf32> -> vector<2x64xf32>
    %cst_12 = arith.constant dense<0.000000e+00> : vector<2x256xf32>
    %75 = tpu.matmul %74, %0, %cst_12 {dimension_numbers = #tpu.dot_dimension_numbers<[1], [0], [0], [1], [0, 0, 1, 1], [], []>} : vector<2x64xf32>, vector<64x256xf32>, vector<2x256xf32> -> vector<2x256xf32>
    %76 = vector.extract_strided_slice %75 {offsets = [0, 128], sizes = [2, 128], strides = [1, 1]} : vector<2x256xf32> to vector<2x128xf32>
    %77 = vector.broadcast %6 : vector<1x128xf32> to vector<2x128xf32>
    %78 = arith.addf %76, %77 : vector<2x128xf32>
    %79 = vector.extract_strided_slice %75 {offsets = [0, 0], sizes = [2, 128], strides = [1, 1]} : vector<2x256xf32> to vector<2x128xf32>
    %80 = arith.addf %79, %15 : vector<2x128xf32>
    %81 = arith.negf %80 : vector<2x128xf32>
    %82 = math.exp %81 : vector<2x128xf32>
    %cst_13 = arith.constant 1.000000e+00 : f32
    %83 = vector.broadcast %cst_13 : f32 to vector<2x128xf32>
    %84 = arith.addf %83, %82 : vector<2x128xf32>
    %85 = arith.divf %83, %84 : vector<2x128xf32>
    %86 = math.tanh %80 : vector<2x128xf32>
    %87 = vector.extract_strided_slice %85 {offsets = [0, 0], sizes = [2, 32], strides = [1, 1]} : vector<2x128xf32> to vector<2x32xf32>
    %88 = vector.extract_strided_slice %85 {offsets = [0, 32], sizes = [2, 32], strides = [1, 1]} : vector<2x128xf32> to vector<2x32xf32>
    %89 = vector.extract_strided_slice %86 {offsets = [0, 64], sizes = [2, 32], strides = [1, 1]} : vector<2x128xf32> to vector<2x32xf32>
    %90 = vector.extract_strided_slice %85 {offsets = [0, 96], sizes = [2, 32], strides = [1, 1]} : vector<2x128xf32> to vector<2x32xf32>
    %91 = arith.mulf %88, %56 : vector<2x32xf32>
    %92 = arith.mulf %87, %89 : vector<2x32xf32>
    %93 = arith.addf %91, %92 : vector<2x32xf32>
    %94 = math.tanh %93 : vector<2x32xf32>
    %95 = arith.mulf %90, %94 : vector<2x32xf32>
    %96 = arith.negf %78 : vector<2x128xf32>
    %97 = math.exp %96 : vector<2x128xf32>
    %cst_14 = arith.constant 1.000000e+00 : f32
    %98 = vector.broadcast %cst_14 : f32 to vector<2x128xf32>
    %99 = arith.addf %98, %97 : vector<2x128xf32>
    %100 = arith.divf %98, %99 : vector<2x128xf32>
    %101 = math.tanh %78 : vector<2x128xf32>
    %102 = vector.extract_strided_slice %100 {offsets = [0, 0], sizes = [2, 32], strides = [1, 1]} : vector<2x128xf32> to vector<2x32xf32>
    %103 = vector.extract_strided_slice %100 {offsets = [0, 32], sizes = [2, 32], strides = [1, 1]} : vector<2x128xf32> to vector<2x32xf32>
    %104 = vector.extract_strided_slice %101 {offsets = [0, 64], sizes = [2, 32], strides = [1, 1]} : vector<2x128xf32> to vector<2x32xf32>
    %105 = vector.extract_strided_slice %100 {offsets = [0, 96], sizes = [2, 32], strides = [1, 1]} : vector<2x128xf32> to vector<2x32xf32>
    %106 = arith.mulf %103, %71 : vector<2x32xf32>
    %107 = arith.mulf %102, %104 : vector<2x32xf32>
    %108 = arith.addf %106, %107 : vector<2x32xf32>
    %109 = math.tanh %108 : vector<2x32xf32>
    %110 = arith.mulf %105, %109 : vector<2x32xf32>
    %111 = tpu.concatenate %95, %110 in 1 : vector<2x32xf32>, vector<2x32xf32> -> vector<2x64xf32>
    %cst_15 = arith.constant dense<0.000000e+00> : vector<2x256xf32>
    %112 = tpu.matmul %111, %0, %cst_15 {dimension_numbers = #tpu.dot_dimension_numbers<[1], [0], [0], [1], [0, 0, 1, 1], [], []>} : vector<2x64xf32>, vector<64x256xf32>, vector<2x256xf32> -> vector<2x256xf32>
    %113 = vector.extract_strided_slice %112 {offsets = [0, 128], sizes = [2, 128], strides = [1, 1]} : vector<2x256xf32> to vector<2x128xf32>
    %114 = vector.broadcast %6 : vector<1x128xf32> to vector<2x128xf32>
    %115 = arith.addf %113, %114 : vector<2x128xf32>
    %116 = vector.extract_strided_slice %112 {offsets = [0, 0], sizes = [2, 128], strides = [1, 1]} : vector<2x256xf32> to vector<2x128xf32>
    %117 = arith.addf %116, %16 : vector<2x128xf32>
    %118 = arith.negf %117 : vector<2x128xf32>
    %119 = math.exp %118 : vector<2x128xf32>
    %cst_16 = arith.constant 1.000000e+00 : f32
    %120 = vector.broadcast %cst_16 : f32 to vector<2x128xf32>
    %121 = arith.addf %120, %119 : vector<2x128xf32>
    %122 = arith.divf %120, %121 : vector<2x128xf32>
    %123 = math.tanh %117 : vector<2x128xf32>
    %124 = vector.extract_strided_slice %122 {offsets = [0, 0], sizes = [2, 32], strides = [1, 1]} : vector<2x128xf32> to vector<2x32xf32>
    %125 = vector.extract_strided_slice %122 {offsets = [0, 32], sizes = [2, 32], strides = [1, 1]} : vector<2x128xf32> to vector<2x32xf32>
    %126 = vector.extract_strided_slice %123 {offsets = [0, 64], sizes = [2, 32], strides = [1, 1]} : vector<2x128xf32> to vector<2x32xf32>
    %127 = vector.extract_strided_slice %122 {offsets = [0, 96], sizes = [2, 32], strides = [1, 1]} : vector<2x128xf32> to vector<2x32xf32>
    %128 = arith.mulf %125, %93 : vector<2x32xf32>
    %129 = arith.mulf %124, %126 : vector<2x32xf32>
    %130 = arith.addf %128, %129 : vector<2x32xf32>
    %131 = math.tanh %130 : vector<2x32xf32>
    %132 = arith.mulf %127, %131 : vector<2x32xf32>
    %133 = arith.negf %115 : vector<2x128xf32>
    %134 = math.exp %133 : vector<2x128xf32>
    %cst_17 = arith.constant 1.000000e+00 : f32
    %135 = vector.broadcast %cst_17 : f32 to vector<2x128xf32>
    %136 = arith.addf %135, %134 : vector<2x128xf32>
    %137 = arith.divf %135, %136 : vector<2x128xf32>
    %138 = math.tanh %115 : vector<2x128xf32>
    %139 = vector.extract_strided_slice %137 {offsets = [0, 0], sizes = [2, 32], strides = [1, 1]} : vector<2x128xf32> to vector<2x32xf32>
    %140 = vector.extract_strided_slice %137 {offsets = [0, 32], sizes = [2, 32], strides = [1, 1]} : vector<2x128xf32> to vector<2x32xf32>
    %141 = vector.extract_strided_slice %138 {offsets = [0, 64], sizes = [2, 32], strides = [1, 1]} : vector<2x128xf32> to vector<2x32xf32>
    %142 = vector.extract_strided_slice %137 {offsets = [0, 96], sizes = [2, 32], strides = [1, 1]} : vector<2x128xf32> to vector<2x32xf32>
    %143 = arith.mulf %140, %108 : vector<2x32xf32>
    %144 = arith.mulf %139, %141 : vector<2x32xf32>
    %145 = arith.addf %143, %144 : vector<2x32xf32>
    %146 = math.tanh %145 : vector<2x32xf32>
    %147 = arith.mulf %142, %146 : vector<2x32xf32>
    %148 = tpu.concatenate %132, %147 in 1 : vector<2x32xf32>, vector<2x32xf32> -> vector<2x64xf32>
    %cst_18 = arith.constant dense<0.000000e+00> : vector<2x256xf32>
    %149 = tpu.matmul %148, %0, %cst_18 {dimension_numbers = #tpu.dot_dimension_numbers<[1], [0], [0], [1], [0, 0, 1, 1], [], []>} : vector<2x64xf32>, vector<64x256xf32>, vector<2x256xf32> -> vector<2x256xf32>
    %150 = vector.extract_strided_slice %149 {offsets = [0, 128], sizes = [2, 128], strides = [1, 1]} : vector<2x256xf32> to vector<2x128xf32>
    %151 = vector.broadcast %6 : vector<1x128xf32> to vector<2x128xf32>
    %152 = arith.addf %150, %151 : vector<2x128xf32>
    %153 = vector.extract_strided_slice %149 {offsets = [0, 0], sizes = [2, 128], strides = [1, 1]} : vector<2x256xf32> to vector<2x128xf32>
    %154 = arith.addf %153, %17 : vector<2x128xf32>
    %155 = arith.negf %154 : vector<2x128xf32>
    %156 = math.exp %155 : vector<2x128xf32>
    %cst_19 = arith.constant 1.000000e+00 : f32
    %157 = vector.broadcast %cst_19 : f32 to vector<2x128xf32>
    %158 = arith.addf %157, %156 : vector<2x128xf32>
    %159 = arith.divf %157, %158 : vector<2x128xf32>
    %160 = math.tanh %154 : vector<2x128xf32>
    %161 = vector.extract_strided_slice %159 {offsets = [0, 0], sizes = [2, 32], strides = [1, 1]} : vector<2x128xf32> to vector<2x32xf32>
    %162 = vector.extract_strided_slice %159 {offsets = [0, 32], sizes = [2, 32], strides = [1, 1]} : vector<2x128xf32> to vector<2x32xf32>
    %163 = vector.extract_strided_slice %160 {offsets = [0, 64], sizes = [2, 32], strides = [1, 1]} : vector<2x128xf32> to vector<2x32xf32>
    %164 = vector.extract_strided_slice %159 {offsets = [0, 96], sizes = [2, 32], strides = [1, 1]} : vector<2x128xf32> to vector<2x32xf32>
    %165 = arith.mulf %162, %130 : vector<2x32xf32>
    %166 = arith.mulf %161, %163 : vector<2x32xf32>
    %167 = arith.addf %165, %166 : vector<2x32xf32>
    %168 = math.tanh %167 : vector<2x32xf32>
    %169 = arith.mulf %164, %168 : vector<2x32xf32>
    %170 = arith.negf %152 : vector<2x128xf32>
    %171 = math.exp %170 : vector<2x128xf32>
    %cst_20 = arith.constant 1.000000e+00 : f32
    %172 = vector.broadcast %cst_20 : f32 to vector<2x128xf32>
    %173 = arith.addf %172, %171 : vector<2x128xf32>
    %174 = arith.divf %172, %173 : vector<2x128xf32>
    %175 = math.tanh %152 : vector<2x128xf32>
    %176 = vector.extract_strided_slice %174 {offsets = [0, 0], sizes = [2, 32], strides = [1, 1]} : vector<2x128xf32> to vector<2x32xf32>
    %177 = vector.extract_strided_slice %174 {offsets = [0, 32], sizes = [2, 32], strides = [1, 1]} : vector<2x128xf32> to vector<2x32xf32>
    %178 = vector.extract_strided_slice %175 {offsets = [0, 64], sizes = [2, 32], strides = [1, 1]} : vector<2x128xf32> to vector<2x32xf32>
    %179 = vector.extract_strided_slice %174 {offsets = [0, 96], sizes = [2, 32], strides = [1, 1]} : vector<2x128xf32> to vector<2x32xf32>
    %180 = arith.mulf %177, %145 : vector<2x32xf32>
    %181 = arith.mulf %176, %178 : vector<2x32xf32>
    %182 = arith.addf %180, %181 : vector<2x32xf32>
    %183 = math.tanh %182 : vector<2x32xf32>
    %184 = arith.mulf %179, %183 : vector<2x32xf32>
    %185 = tpu.concatenate %169, %184 in 1 : vector<2x32xf32>, vector<2x32xf32> -> vector<2x64xf32>
    %cst_21 = arith.constant dense<0.000000e+00> : vector<2x256xf32>
    %186 = tpu.matmul %185, %0, %cst_21 {dimension_numbers = #tpu.dot_dimension_numbers<[1], [0], [0], [1], [0, 0, 1, 1], [], []>} : vector<2x64xf32>, vector<64x256xf32>, vector<2x256xf32> -> vector<2x256xf32>
    %187 = vector.extract_strided_slice %186 {offsets = [0, 128], sizes = [2, 128], strides = [1, 1]} : vector<2x256xf32> to vector<2x128xf32>
    %188 = vector.broadcast %6 : vector<1x128xf32> to vector<2x128xf32>
    %189 = arith.addf %187, %188 : vector<2x128xf32>
    %190 = vector.extract_strided_slice %186 {offsets = [0, 0], sizes = [2, 128], strides = [1, 1]} : vector<2x256xf32> to vector<2x128xf32>
    %191 = arith.addf %190, %18 : vector<2x128xf32>
    %192 = arith.negf %191 : vector<2x128xf32>
    %193 = math.exp %192 : vector<2x128xf32>
    %cst_22 = arith.constant 1.000000e+00 : f32
    %194 = vector.broadcast %cst_22 : f32 to vector<2x128xf32>
    %195 = arith.addf %194, %193 : vector<2x128xf32>
    %196 = arith.divf %194, %195 : vector<2x128xf32>
    %197 = math.tanh %191 : vector<2x128xf32>
    %198 = vector.extract_strided_slice %196 {offsets = [0, 0], sizes = [2, 32], strides = [1, 1]} : vector<2x128xf32> to vector<2x32xf32>
    %199 = vector.extract_strided_slice %196 {offsets = [0, 32], sizes = [2, 32], strides = [1, 1]} : vector<2x128xf32> to vector<2x32xf32>
    %200 = vector.extract_strided_slice %197 {offsets = [0, 64], sizes = [2, 32], strides = [1, 1]} : vector<2x128xf32> to vector<2x32xf32>
    %201 = vector.extract_strided_slice %196 {offsets = [0, 96], sizes = [2, 32], strides = [1, 1]} : vector<2x128xf32> to vector<2x32xf32>
    %202 = arith.mulf %199, %167 : vector<2x32xf32>
    %203 = arith.mulf %198, %200 : vector<2x32xf32>
    %204 = arith.addf %202, %203 : vector<2x32xf32>
    %205 = math.tanh %204 : vector<2x32xf32>
    %206 = arith.mulf %201, %205 : vector<2x32xf32>
    %207 = arith.negf %189 : vector<2x128xf32>
    %208 = math.exp %207 : vector<2x128xf32>
    %cst_23 = arith.constant 1.000000e+00 : f32
    %209 = vector.broadcast %cst_23 : f32 to vector<2x128xf32>
    %210 = arith.addf %209, %208 : vector<2x128xf32>
    %211 = arith.divf %209, %210 : vector<2x128xf32>
    %212 = math.tanh %189 : vector<2x128xf32>
    %213 = vector.extract_strided_slice %211 {offsets = [0, 0], sizes = [2, 32], strides = [1, 1]} : vector<2x128xf32> to vector<2x32xf32>
    %214 = vector.extract_strided_slice %211 {offsets = [0, 32], sizes = [2, 32], strides = [1, 1]} : vector<2x128xf32> to vector<2x32xf32>
    %215 = vector.extract_strided_slice %212 {offsets = [0, 64], sizes = [2, 32], strides = [1, 1]} : vector<2x128xf32> to vector<2x32xf32>
    %216 = vector.extract_strided_slice %211 {offsets = [0, 96], sizes = [2, 32], strides = [1, 1]} : vector<2x128xf32> to vector<2x32xf32>
    %217 = arith.mulf %214, %182 : vector<2x32xf32>
    %218 = arith.mulf %213, %215 : vector<2x32xf32>
    %219 = arith.addf %217, %218 : vector<2x32xf32>
    %220 = math.tanh %219 : vector<2x32xf32>
    %221 = arith.mulf %216, %220 : vector<2x32xf32>
    %222 = tpu.concatenate %206, %221 in 1 : vector<2x32xf32>, vector<2x32xf32> -> vector<2x64xf32>
    %cst_24 = arith.constant dense<0.000000e+00> : vector<2x256xf32>
    %223 = tpu.matmul %222, %0, %cst_24 {dimension_numbers = #tpu.dot_dimension_numbers<[1], [0], [0], [1], [0, 0, 1, 1], [], []>} : vector<2x64xf32>, vector<64x256xf32>, vector<2x256xf32> -> vector<2x256xf32>
    %224 = vector.extract_strided_slice %223 {offsets = [0, 128], sizes = [2, 128], strides = [1, 1]} : vector<2x256xf32> to vector<2x128xf32>
    %225 = vector.broadcast %6 : vector<1x128xf32> to vector<2x128xf32>
    %226 = arith.addf %224, %225 : vector<2x128xf32>
    %227 = vector.extract_strided_slice %223 {offsets = [0, 0], sizes = [2, 128], strides = [1, 1]} : vector<2x256xf32> to vector<2x128xf32>
    %228 = arith.addf %227, %19 : vector<2x128xf32>
    %229 = arith.negf %228 : vector<2x128xf32>
    %230 = math.exp %229 : vector<2x128xf32>
    %cst_25 = arith.constant 1.000000e+00 : f32
    %231 = vector.broadcast %cst_25 : f32 to vector<2x128xf32>
    %232 = arith.addf %231, %230 : vector<2x128xf32>
    %233 = arith.divf %231, %232 : vector<2x128xf32>
    %234 = math.tanh %228 : vector<2x128xf32>
    %235 = vector.extract_strided_slice %233 {offsets = [0, 0], sizes = [2, 32], strides = [1, 1]} : vector<2x128xf32> to vector<2x32xf32>
    %236 = vector.extract_strided_slice %233 {offsets = [0, 32], sizes = [2, 32], strides = [1, 1]} : vector<2x128xf32> to vector<2x32xf32>
    %237 = vector.extract_strided_slice %234 {offsets = [0, 64], sizes = [2, 32], strides = [1, 1]} : vector<2x128xf32> to vector<2x32xf32>
    %238 = vector.extract_strided_slice %233 {offsets = [0, 96], sizes = [2, 32], strides = [1, 1]} : vector<2x128xf32> to vector<2x32xf32>
    %239 = arith.mulf %236, %204 : vector<2x32xf32>
    %240 = arith.mulf %235, %237 : vector<2x32xf32>
    %241 = arith.addf %239, %240 : vector<2x32xf32>
    %242 = math.tanh %241 : vector<2x32xf32>
    %243 = arith.mulf %238, %242 : vector<2x32xf32>
    %244 = arith.negf %226 : vector<2x128xf32>
    %245 = math.exp %244 : vector<2x128xf32>
    %cst_26 = arith.constant 1.000000e+00 : f32
    %246 = vector.broadcast %cst_26 : f32 to vector<2x128xf32>
    %247 = arith.addf %246, %245 : vector<2x128xf32>
    %248 = arith.divf %246, %247 : vector<2x128xf32>
    %249 = math.tanh %226 : vector<2x128xf32>
    %250 = vector.extract_strided_slice %248 {offsets = [0, 0], sizes = [2, 32], strides = [1, 1]} : vector<2x128xf32> to vector<2x32xf32>
    %251 = vector.extract_strided_slice %248 {offsets = [0, 32], sizes = [2, 32], strides = [1, 1]} : vector<2x128xf32> to vector<2x32xf32>
    %252 = vector.extract_strided_slice %249 {offsets = [0, 64], sizes = [2, 32], strides = [1, 1]} : vector<2x128xf32> to vector<2x32xf32>
    %253 = vector.extract_strided_slice %248 {offsets = [0, 96], sizes = [2, 32], strides = [1, 1]} : vector<2x128xf32> to vector<2x32xf32>
    %254 = arith.mulf %251, %219 : vector<2x32xf32>
    %255 = arith.mulf %250, %252 : vector<2x32xf32>
    %256 = arith.addf %254, %255 : vector<2x32xf32>
    %257 = math.tanh %256 : vector<2x32xf32>
    %258 = arith.mulf %253, %257 : vector<2x32xf32>
    %259 = tpu.concatenate %243, %258 in 1 : vector<2x32xf32>, vector<2x32xf32> -> vector<2x64xf32>
    %cst_27 = arith.constant dense<0.000000e+00> : vector<2x256xf32>
    %260 = tpu.matmul %259, %0, %cst_27 {dimension_numbers = #tpu.dot_dimension_numbers<[1], [0], [0], [1], [0, 0, 1, 1], [], []>} : vector<2x64xf32>, vector<64x256xf32>, vector<2x256xf32> -> vector<2x256xf32>
    %261 = vector.extract_strided_slice %260 {offsets = [0, 128], sizes = [2, 128], strides = [1, 1]} : vector<2x256xf32> to vector<2x128xf32>
    %262 = vector.broadcast %6 : vector<1x128xf32> to vector<2x128xf32>
    %263 = arith.addf %261, %262 : vector<2x128xf32>
    %264 = vector.extract_strided_slice %260 {offsets = [0, 0], sizes = [2, 128], strides = [1, 1]} : vector<2x256xf32> to vector<2x128xf32>
    %265 = arith.addf %264, %20 : vector<2x128xf32>
    %266 = arith.negf %265 : vector<2x128xf32>
    %267 = math.exp %266 : vector<2x128xf32>
    %cst_28 = arith.constant 1.000000e+00 : f32
    %268 = vector.broadcast %cst_28 : f32 to vector<2x128xf32>
    %269 = arith.addf %268, %267 : vector<2x128xf32>
    %270 = arith.divf %268, %269 : vector<2x128xf32>
    %271 = math.tanh %265 : vector<2x128xf32>
    %272 = vector.extract_strided_slice %270 {offsets = [0, 0], sizes = [2, 32], strides = [1, 1]} : vector<2x128xf32> to vector<2x32xf32>
    %273 = vector.extract_strided_slice %270 {offsets = [0, 32], sizes = [2, 32], strides = [1, 1]} : vector<2x128xf32> to vector<2x32xf32>
    %274 = vector.extract_strided_slice %271 {offsets = [0, 64], sizes = [2, 32], strides = [1, 1]} : vector<2x128xf32> to vector<2x32xf32>
    %275 = vector.extract_strided_slice %270 {offsets = [0, 96], sizes = [2, 32], strides = [1, 1]} : vector<2x128xf32> to vector<2x32xf32>
    %276 = arith.mulf %273, %241 : vector<2x32xf32>
    %277 = arith.mulf %272, %274 : vector<2x32xf32>
    %278 = arith.addf %276, %277 : vector<2x32xf32>
    %279 = math.tanh %278 : vector<2x32xf32>
    %280 = arith.mulf %275, %279 : vector<2x32xf32>
    %281 = arith.negf %263 : vector<2x128xf32>
    %282 = math.exp %281 : vector<2x128xf32>
    %cst_29 = arith.constant 1.000000e+00 : f32
    %283 = vector.broadcast %cst_29 : f32 to vector<2x128xf32>
    %284 = arith.addf %283, %282 : vector<2x128xf32>
    %285 = arith.divf %283, %284 : vector<2x128xf32>
    %286 = math.tanh %263 : vector<2x128xf32>
    %287 = vector.extract_strided_slice %285 {offsets = [0, 0], sizes = [2, 32], strides = [1, 1]} : vector<2x128xf32> to vector<2x32xf32>
    %288 = vector.extract_strided_slice %285 {offsets = [0, 32], sizes = [2, 32], strides = [1, 1]} : vector<2x128xf32> to vector<2x32xf32>
    %289 = vector.extract_strided_slice %286 {offsets = [0, 64], sizes = [2, 32], strides = [1, 1]} : vector<2x128xf32> to vector<2x32xf32>
    %290 = vector.extract_strided_slice %285 {offsets = [0, 96], sizes = [2, 32], strides = [1, 1]} : vector<2x128xf32> to vector<2x32xf32>
    %291 = arith.mulf %288, %256 : vector<2x32xf32>
    %292 = arith.mulf %287, %289 : vector<2x32xf32>
    %293 = arith.addf %291, %292 : vector<2x32xf32>
    %294 = math.tanh %293 : vector<2x32xf32>
    %295 = arith.mulf %290, %294 : vector<2x32xf32>
    %296 = tpu.concatenate %280, %295 in 1 : vector<2x32xf32>, vector<2x32xf32> -> vector<2x64xf32>
    %cst_30 = arith.constant dense<0.000000e+00> : vector<2x256xf32>
    %297 = tpu.matmul %296, %0, %cst_30 {dimension_numbers = #tpu.dot_dimension_numbers<[1], [0], [0], [1], [0, 0, 1, 1], [], []>} : vector<2x64xf32>, vector<64x256xf32>, vector<2x256xf32> -> vector<2x256xf32>
    %298 = vector.extract_strided_slice %297 {offsets = [0, 128], sizes = [2, 128], strides = [1, 1]} : vector<2x256xf32> to vector<2x128xf32>
    %299 = vector.broadcast %6 : vector<1x128xf32> to vector<2x128xf32>
    %300 = arith.addf %298, %299 : vector<2x128xf32>
    %301 = arith.negf %300 : vector<2x128xf32>
    %302 = math.exp %301 : vector<2x128xf32>
    %cst_31 = arith.constant 1.000000e+00 : f32
    %303 = vector.broadcast %cst_31 : f32 to vector<2x128xf32>
    %304 = arith.addf %303, %302 : vector<2x128xf32>
    %305 = arith.divf %303, %304 : vector<2x128xf32>
    %306 = math.tanh %300 : vector<2x128xf32>
    %307 = vector.extract_strided_slice %305 {offsets = [0, 0], sizes = [2, 32], strides = [1, 1]} : vector<2x128xf32> to vector<2x32xf32>
    %308 = vector.extract_strided_slice %305 {offsets = [0, 32], sizes = [2, 32], strides = [1, 1]} : vector<2x128xf32> to vector<2x32xf32>
    %309 = vector.extract_strided_slice %306 {offsets = [0, 64], sizes = [2, 32], strides = [1, 1]} : vector<2x128xf32> to vector<2x32xf32>
    %310 = vector.extract_strided_slice %305 {offsets = [0, 96], sizes = [2, 32], strides = [1, 1]} : vector<2x128xf32> to vector<2x32xf32>
    %311 = arith.mulf %308, %293 : vector<2x32xf32>
    %312 = arith.mulf %307, %309 : vector<2x32xf32>
    %313 = arith.addf %311, %312 : vector<2x32xf32>
    %314 = math.tanh %313 : vector<2x32xf32>
    %315 = arith.mulf %310, %314 : vector<2x32xf32>
    %316 = math.tanh %73 : vector<2x32xf32>
    %317 = vector.broadcast %8 : vector<1x32xf32> to vector<2x32xf32>
    %318 = arith.mulf %316, %317 : vector<2x32xf32>
    %cst_32 = arith.constant dense<0.000000e+00> : vector<2xf32>
    %319 = vector.multi_reduction <add>, %318, %cst_32 [1] : vector<2x32xf32> to vector<2xf32>
    %320 = vector.shape_cast %319 : vector<2xf32> to vector<2x1xf32>
    %321 = math.tanh %110 : vector<2x32xf32>
    %322 = vector.broadcast %8 : vector<1x32xf32> to vector<2x32xf32>
    %323 = arith.mulf %321, %322 : vector<2x32xf32>
    %cst_33 = arith.constant dense<0.000000e+00> : vector<2xf32>
    %324 = vector.multi_reduction <add>, %323, %cst_33 [1] : vector<2x32xf32> to vector<2xf32>
    %325 = vector.shape_cast %324 : vector<2xf32> to vector<2x1xf32>
    %326 = math.tanh %147 : vector<2x32xf32>
    %327 = vector.broadcast %8 : vector<1x32xf32> to vector<2x32xf32>
    %328 = arith.mulf %326, %327 : vector<2x32xf32>
    %cst_34 = arith.constant dense<0.000000e+00> : vector<2xf32>
    %329 = vector.multi_reduction <add>, %328, %cst_34 [1] : vector<2x32xf32> to vector<2xf32>
    %330 = vector.shape_cast %329 : vector<2xf32> to vector<2x1xf32>
    %331 = math.tanh %184 : vector<2x32xf32>
    %332 = vector.broadcast %8 : vector<1x32xf32> to vector<2x32xf32>
    %333 = arith.mulf %331, %332 : vector<2x32xf32>
    %cst_35 = arith.constant dense<0.000000e+00> : vector<2xf32>
    %334 = vector.multi_reduction <add>, %333, %cst_35 [1] : vector<2x32xf32> to vector<2xf32>
    %335 = vector.shape_cast %334 : vector<2xf32> to vector<2x1xf32>
    %336 = math.tanh %221 : vector<2x32xf32>
    %337 = vector.broadcast %8 : vector<1x32xf32> to vector<2x32xf32>
    %338 = arith.mulf %336, %337 : vector<2x32xf32>
    %cst_36 = arith.constant dense<0.000000e+00> : vector<2xf32>
    %339 = vector.multi_reduction <add>, %338, %cst_36 [1] : vector<2x32xf32> to vector<2xf32>
    %340 = vector.shape_cast %339 : vector<2xf32> to vector<2x1xf32>
    %341 = math.tanh %258 : vector<2x32xf32>
    %342 = vector.broadcast %8 : vector<1x32xf32> to vector<2x32xf32>
    %343 = arith.mulf %341, %342 : vector<2x32xf32>
    %cst_37 = arith.constant dense<0.000000e+00> : vector<2xf32>
    %344 = vector.multi_reduction <add>, %343, %cst_37 [1] : vector<2x32xf32> to vector<2xf32>
    %345 = vector.shape_cast %344 : vector<2xf32> to vector<2x1xf32>
    %346 = math.tanh %295 : vector<2x32xf32>
    %347 = vector.broadcast %8 : vector<1x32xf32> to vector<2x32xf32>
    %348 = arith.mulf %346, %347 : vector<2x32xf32>
    %cst_38 = arith.constant dense<0.000000e+00> : vector<2xf32>
    %349 = vector.multi_reduction <add>, %348, %cst_38 [1] : vector<2x32xf32> to vector<2xf32>
    %350 = vector.shape_cast %349 : vector<2xf32> to vector<2x1xf32>
    %351 = math.tanh %315 : vector<2x32xf32>
    %352 = vector.broadcast %8 : vector<1x32xf32> to vector<2x32xf32>
    %353 = arith.mulf %351, %352 : vector<2x32xf32>
    %cst_39 = arith.constant dense<0.000000e+00> : vector<2xf32>
    %354 = vector.multi_reduction <add>, %353, %cst_39 [1] : vector<2x32xf32> to vector<2xf32>
    %355 = vector.shape_cast %354 : vector<2xf32> to vector<2x1xf32>
    %356 = arith.maximumf %320, %325 : vector<2x1xf32>
    %357 = arith.maximumf %356, %330 : vector<2x1xf32>
    %358 = arith.maximumf %357, %335 : vector<2x1xf32>
    %359 = arith.maximumf %358, %340 : vector<2x1xf32>
    %360 = arith.maximumf %359, %345 : vector<2x1xf32>
    %361 = arith.maximumf %360, %350 : vector<2x1xf32>
    %362 = arith.maximumf %361, %355 : vector<2x1xf32>
    %363 = arith.subf %320, %362 : vector<2x1xf32>
    %364 = math.exp %363 : vector<2x1xf32>
    %365 = arith.subf %325, %362 : vector<2x1xf32>
    %366 = math.exp %365 : vector<2x1xf32>
    %367 = arith.subf %330, %362 : vector<2x1xf32>
    %368 = math.exp %367 : vector<2x1xf32>
    %369 = arith.subf %335, %362 : vector<2x1xf32>
    %370 = math.exp %369 : vector<2x1xf32>
    %371 = arith.subf %340, %362 : vector<2x1xf32>
    %372 = math.exp %371 : vector<2x1xf32>
    %373 = arith.subf %345, %362 : vector<2x1xf32>
    %374 = math.exp %373 : vector<2x1xf32>
    %375 = arith.subf %350, %362 : vector<2x1xf32>
    %376 = math.exp %375 : vector<2x1xf32>
    %377 = arith.subf %355, %362 : vector<2x1xf32>
    %378 = math.exp %377 : vector<2x1xf32>
    %379 = vector.broadcast %364 : vector<2x1xf32> to vector<2x32xf32>
    %380 = arith.mulf %73, %379 : vector<2x32xf32>
    %381 = arith.addf %364, %366 : vector<2x1xf32>
    %382 = vector.broadcast %366 : vector<2x1xf32> to vector<2x32xf32>
    %383 = arith.mulf %110, %382 : vector<2x32xf32>
    %384 = arith.addf %380, %383 : vector<2x32xf32>
    %385 = arith.addf %381, %368 : vector<2x1xf32>
    %386 = vector.broadcast %368 : vector<2x1xf32> to vector<2x32xf32>
    %387 = arith.mulf %147, %386 : vector<2x32xf32>
    %388 = arith.addf %384, %387 : vector<2x32xf32>
    %389 = arith.addf %385, %370 : vector<2x1xf32>
    %390 = vector.broadcast %370 : vector<2x1xf32> to vector<2x32xf32>
    %391 = arith.mulf %184, %390 : vector<2x32xf32>
    %392 = arith.addf %388, %391 : vector<2x32xf32>
    %393 = arith.addf %389, %372 : vector<2x1xf32>
    %394 = vector.broadcast %372 : vector<2x1xf32> to vector<2x32xf32>
    %395 = arith.mulf %221, %394 : vector<2x32xf32>
    %396 = arith.addf %392, %395 : vector<2x32xf32>
    %397 = arith.addf %393, %374 : vector<2x1xf32>
    %398 = vector.broadcast %374 : vector<2x1xf32> to vector<2x32xf32>
    %399 = arith.mulf %258, %398 : vector<2x32xf32>
    %400 = arith.addf %396, %399 : vector<2x32xf32>
    %401 = arith.addf %397, %376 : vector<2x1xf32>
    %402 = vector.broadcast %376 : vector<2x1xf32> to vector<2x32xf32>
    %403 = arith.mulf %295, %402 : vector<2x32xf32>
    %404 = arith.addf %400, %403 : vector<2x32xf32>
    %405 = arith.addf %401, %378 : vector<2x1xf32>
    %406 = vector.broadcast %378 : vector<2x1xf32> to vector<2x32xf32>
    %407 = arith.mulf %315, %406 : vector<2x32xf32>
    %408 = arith.addf %404, %407 : vector<2x32xf32>
    %409 = vector.broadcast %405 : vector<2x1xf32> to vector<2x32xf32>
    %410 = arith.divf %408, %409 : vector<2x32xf32>
    %c104 = arith.constant 104 : index
    %c0_40 = arith.constant 0 : index
    %411 = vector.load %arg1[%c104, %c0_40] : memref<184x256xf32, #tpu.memory_space<vmem>>, vector<32x256xf32>
    %412 = vector.extract_strided_slice %411 {offsets = [0, 0], sizes = [32, 16], strides = [1, 1]} : vector<32x256xf32> to vector<32x16xf32>
    %c136 = arith.constant 136 : index
    %c0_41 = arith.constant 0 : index
    %413 = vector.load %arg1[%c136, %c0_41] : memref<184x256xf32, #tpu.memory_space<vmem>>, vector<1x256xf32>
    %414 = vector.extract_strided_slice %413 {offsets = [0, 0], sizes = [1, 16], strides = [1, 1]} : vector<1x256xf32> to vector<1x16xf32>
    %c144 = arith.constant 144 : index
    %c0_42 = arith.constant 0 : index
    %415 = vector.load %arg1[%c144, %c0_42] : memref<184x256xf32, #tpu.memory_space<vmem>>, vector<16x256xf32>
    %416 = vector.extract_strided_slice %415 {offsets = [0, 0], sizes = [16, 8], strides = [1, 1]} : vector<16x256xf32> to vector<16x8xf32>
    %c160 = arith.constant 160 : index
    %c0_43 = arith.constant 0 : index
    %417 = vector.load %arg1[%c160, %c0_43] : memref<184x256xf32, #tpu.memory_space<vmem>>, vector<1x256xf32>
    %418 = vector.extract_strided_slice %417 {offsets = [0, 0], sizes = [1, 8], strides = [1, 1]} : vector<1x256xf32> to vector<1x8xf32>
    %c168 = arith.constant 168 : index
    %c0_44 = arith.constant 0 : index
    %419 = vector.load %arg1[%c168, %c0_44] : memref<184x256xf32, #tpu.memory_space<vmem>>, vector<8x256xf32>
    %420 = vector.extract_strided_slice %419 {offsets = [0, 0], sizes = [8, 4], strides = [1, 1]} : vector<8x256xf32> to vector<8x4xf32>
    %c176 = arith.constant 176 : index
    %c0_45 = arith.constant 0 : index
    %421 = vector.load %arg1[%c176, %c0_45] : memref<184x256xf32, #tpu.memory_space<vmem>>, vector<1x256xf32>
    %422 = vector.extract_strided_slice %421 {offsets = [0, 0], sizes = [1, 4], strides = [1, 1]} : vector<1x256xf32> to vector<1x4xf32>
    %cst_46 = arith.constant dense<0.000000e+00> : vector<2x16xf32>
    %423 = tpu.matmul %410, %412, %cst_46 {dimension_numbers = #tpu.dot_dimension_numbers<[1], [0], [0], [1], [0, 0, 1, 1], [], []>} : vector<2x32xf32>, vector<32x16xf32>, vector<2x16xf32> -> vector<2x16xf32>
    %424 = vector.broadcast %414 : vector<1x16xf32> to vector<2x16xf32>
    %425 = arith.addf %423, %424 : vector<2x16xf32>
    %cst_47 = arith.constant 0.000000e+00 : f32
    %426 = vector.broadcast %cst_47 : f32 to vector<2x16xf32>
    %427 = arith.maximumf %425, %426 : vector<2x16xf32>
    %cst_48 = arith.constant dense<0.000000e+00> : vector<2x8xf32>
    %428 = tpu.matmul %427, %416, %cst_48 {dimension_numbers = #tpu.dot_dimension_numbers<[1], [0], [0], [1], [0, 0, 1, 1], [], []>} : vector<2x16xf32>, vector<16x8xf32>, vector<2x8xf32> -> vector<2x8xf32>
    %429 = vector.broadcast %418 : vector<1x8xf32> to vector<2x8xf32>
    %430 = arith.addf %428, %429 : vector<2x8xf32>
    %cst_49 = arith.constant 0.000000e+00 : f32
    %431 = vector.broadcast %cst_49 : f32 to vector<2x8xf32>
    %432 = arith.maximumf %430, %431 : vector<2x8xf32>
    %cst_50 = arith.constant dense<0.000000e+00> : vector<2x4xf32>
    %433 = tpu.matmul %432, %420, %cst_50 {dimension_numbers = #tpu.dot_dimension_numbers<[1], [0], [0], [1], [0, 0, 1, 1], [], []>} : vector<2x8xf32>, vector<8x4xf32>, vector<2x4xf32> -> vector<2x4xf32>
    %434 = vector.broadcast %422 : vector<1x4xf32> to vector<2x4xf32>
    %435 = arith.addf %433, %434 : vector<2x4xf32>
    %c0_51 = arith.constant 0 : index
    %c0_52 = arith.constant 0 : index
    %436 = vector.load %arg2[%c0_51, %c0_52] : memref<2x4xf32, #tpu.memory_space<vmem>>, vector<2x4xf32>
    tpu.vector_store %arg2[%c0_51, %c0_52], %435 {strides = array<i32>} : memref<2x4xf32, #tpu.memory_space<vmem>>, vector<2x4xf32>,
    return
  }
}

</mosaic_0001>

<llo_original>
// kernel: lstm_attention_predictor.1
$region0: #{lstm_attention_predictor.1}
  #allocation0 [shape = 'u32[]', space=smem, size = 0x4, offset = 0x4, fixed_abs, tag = 'smem constant byte address 0x4 - core index']
  #allocation1 [shape = 'u32[144,128]{1,0:T(1,128)}', space=vmem, size = 0x12000, scoped, tag = 'internal scratch']
  %s0 = inlined_call_operand.vmem [shape: f32[16,16], index: 0, kind: input, shape index: {}]
  %s1 = inlined_call_operand.hbm [shape: f32[184,256], index: 1, kind: input, shape index: {}]
  %s2 = inlined_call_operand.hbm [shape: f32[2,4], index: 2, kind: output, shape index: {}]
  %s3 = sld [smem:[#allocation0]]
  $region22: #{lstm_attention_predictor.1} parent=0
    _
  %s5 = ssub.s32 1, %s3
  %s6 = scalar_select 0, %s5, %s3
  $region1: #{lstm_attention_predictor.1} parent=0
    #allocation2 [shape = 'u8[188416]{0}', space=vmem, size = 0x2e000, scoped, tag = 'input window, operand 1, single buffered']
    #allocation3 [shape = 's32[1]{0}', space=sflag, size = 0x4, scoped, tag = 'scoped memory for lstm_attention_predictor.1']
    #allocation4 [shape = 's32[1]{0}', space=sflag, size = 0x4, scoped, tag = 'scoped memory for lstm_attention_predictor.1']
    #allocation5 [shape = 'u8[1024]{0}', space=vmem, size = 0x400, scoped, tag = 'output window, operand 0, single buffered']
    %7 = vsyncpa [#allocation3], 0
    %8 = vsyncpa [#allocation4], 0
    // Predicated region
    $region2: #{lstm_attention_predictor.1} parent=1 // pred_check
      _
    $region3: #{lstm_attention_predictor.1} parent=1 // pred_check_branch
      %10 = sbr.rel (0) target = $region5
    $region4: #{lstm_attention_predictor.1} parent=1 // pred_region
      _
    $region5: #{lstm_attention_predictor.1} parent=1 // pred_fallthru
      _
    // Predicated region
    $region6: #{lstm_attention_predictor.1} parent=1 // pred_check
      _
    $region7: #{lstm_attention_predictor.1} parent=1 // pred_check_branch
      %12 = sbr.rel (0) target = $region9
    $region8: #{lstm_attention_predictor.1} parent=1 // pred_region
      %s14 = ssub.s32 5888, 5888
      %15 = vsyncadd [#allocation3], %s14
      %s16 = sshll.u32 [#allocation2], 4
      %s17 = int_to_ptr.vmem [resolvable:$true] %s16
      %22 = dma.hbm_to_vmem [thread:$0]  %s1, 5888, %s17, [#allocation3], 256, 256, 16
    $region9: #{lstm_attention_predictor.1} parent=1 // pred_fallthru
      _
    // Predicated region
    $region10: #{lstm_attention_predictor.1} parent=1 // pred_check
      _
    $region11: #{lstm_attention_predictor.1} parent=1 // pred_check_branch
      %24 = sbr.rel (0) target = $region13
    $region12: #{lstm_attention_predictor.1} parent=1 // pred_region
      %25 = dma.done [#allocation3], 5888
    $region13: #{lstm_attention_predictor.1} parent=1 // pred_fallthru
      _
    %v26 = vld [vmem:[#allocation2] sm:$0xff]
    %v27 = vld [vmem:[#allocation2 + $0x8] sm:$0xff]
    %v28 = vld [vmem:[#allocation2 + $0x10] sm:$0xff]
    %v29 = vld [vmem:[#allocation2 + $0x18] sm:$0xff]
    %v30 = vld [vmem:[#allocation2 + $0x20] sm:$0xff]
    %v31 = vld [vmem:[#allocation2 + $0x28] sm:$0xff]
    %v32 = vld [vmem:[#allocation2 + $0x30] sm:$0xff]
    %v33 = vld [vmem:[#allocation2 + $0x38] sm:$0xff]
    %v34 = vld [vmem:[#allocation2 + $0x40] sm:$0xff]
    %v35 = vld [vmem:[#allocation2 + $0x48] sm:$0xff]
    %v36 = vld [vmem:[#allocation2 + $0x50] sm:$0xff]
    %v37 = vld [vmem:[#allocation2 + $0x58] sm:$0xff]
    %v38 = vld [vmem:[#allocation2 + $0x60] sm:$0xff]
    %v39 = vld [vmem:[#allocation2 + $0x68] sm:$0xff]
    %v40 = vld [vmem:[#allocation2 + $0x70] sm:$0xff]
    %v41 = vld [vmem:[#allocation2 + $0x78] sm:$0xff]
    %v42 = vld [vmem:[#allocation2 + $0x80] sm:$0xff]
    %v43 = vld [vmem:[#allocation2 + $0x90] sm:$0xff]
    %s44 = scalar_lea.vmem [#allocation2], 160
    %v45 = vld [vmem:[%s44] ss:$8 sm:$0x3]
    %s46 = scalar_lea.vmem [#allocation2], 176
    %v47 = vld [vmem:[%s46] ss:$8 sm:$0x3]
    %s48 = scalar_lea.vmem [#allocation2], 192
    %v49 = vld [vmem:[%s48] ss:$8 sm:$0x3]
    %v50 = vld [vmem:[%s0] sm:$0xff]
    %v51 = vld [vmem:[%s0 + $0x8] sm:$0xff]
    %v53 = vlaneseq
    %v54 = vshrl.u32 %v53, 7
    %v55 = vsub.s32 0, %v54
    %v56 = vrot.slane %v45, %v55
    %vm58 = vcmask 130048
    %v60 = vsel %vm58, %v50, 0
    %v63 = vsel %vm58, %v51, 0
    %65 = vmatprep.subr.mxu0 0.0
    %66 = vmatpush1.msra.mxu0 %v42
    %67 = vmatprep.subr.mxu0 0.0
    %68 = vmatpush1.msra.mxu0 %v43
    %69 = vmatprep.subr.mxu0 0.0
    %70 = vmatpush1.msra.mxu0 0.0
    %71 = vmatprep.subr.mxu0 0.0
    %72 = vmatpush1.msra.mxu0 0.0
    %73 = vmatprep.subr.mxu0 0.0
    %74 = vmatpush1.msra.mxu0 0.0
    %75 = vmatprep.subr.mxu0 0.0
    %76 = vmatpush1.msra.mxu0 0.0
    %77 = vmatprep.subr.mxu0 0.0
    %78 = vmatpush1.msra.mxu0 0.0
    %79 = vmatprep.subr.mxu0 0.0
    %80 = vmatpush1.msra.mxu0 0.0
    %81 = vmatprep.subr.mxu0 0.0
    %82 = vmatpush1.msra.mxu0 0.0
    %83 = vmatprep.subr.mxu0 0.0
    %84 = vmatpush1.msra.mxu0 0.0
    %85 = vmatprep.subr.mxu0 0.0
    %86 = vmatpush1.msra.mxu0 0.0
    %87 = vmatprep.subr.mxu0 0.0
    %88 = vmatpush1.msra.mxu0 0.0
    %89 = vmatprep.subr.mxu0 0.0
    %90 = vmatpush1.msra.mxu0 0.0
    %91 = vmatprep.subr.mxu0 0.0
    %92 = vmatpush1.msra.mxu0 0.0
    %93 = vmatprep.subr.mxu0 0.0
    %94 = vmatpush1.msra.mxu0 0.0
    %95 = vmatprep.subr.mxu0 0.0
    %96 = vmatpush1.msra.mxu0 0.0
    %97 = vmatprep.subr.mxu0 0.0
    %98 = vmatpush1.msra.mxu0 0.0
    %99 = vmatprep.subr.mxu0 0.0
    %100 = vmatpush1.msra.mxu0 0.0
    %101 = vmatprep.subr.mxu0 0.0
    %102 = vmatpush1.msra.mxu0 0.0
    %103 = vmatprep.subr.mxu0 0.0
    %104 = vmatpush1.msra.mxu0 0.0
    %105 = vmatprep.subr.mxu0 0.0
    %106 = vmatpush1.msra.mxu0 0.0
    %107 = vmatprep.subr.mxu0 0.0
    %108 = vmatpush1.msra.mxu0 0.0
    %109 = vmatprep.subr.mxu0 0.0
    %110 = vmatpush1.msra.mxu0 0.0
    %111 = vmatprep.subr.mxu0 0.0
    %112 = vmatpush1.msra.mxu0 0.0
    %113 = vmatprep.subr.mxu0 0.0
    %114 = vmatpush1.msra.mxu0 0.0
    %115 = vmatprep.subr.mxu0 0.0
    %116 = vmatpush1.msra.mxu0 0.0
    %117 = vmatprep.subr.mxu0 0.0
    %118 = vmatpush1.msra.mxu0 0.0
    %119 = vmatprep.subr.mxu0 0.0
    %120 = vmatpush1.msra.mxu0 0.0
    %121 = vmatprep.subr.mxu0 0.0
    %122 = vmatpush1.msra.mxu0 0.0
    %123 = vmatprep.subr.mxu0 0.0
    %124 = vmatpush1.msra.mxu0 0.0
    %125 = vmatprep.subr.mxu0 0.0
    %126 = vmatpush1.msra.mxu0 0.0
    %127 = vmatprep.subr.mxu0 0.0
    %128 = vmatpush1.msra.mxu0 0.0
    %129 = vmatprep.mubr.f32.mxu0 0.0
    %130 = vmatmul.mubr.f32.gmra.mrb[0].mxu0 %v60
    %v131 = vpop.f32.mrb[0].mxu0
    %v132 = vadd.f32 %v56, %v131
    %v133 = vpop.f32.mrb[0].mxu0
    %134 = vmatprep.mubr.f32.mxu0 0.0
    %135 = vmatmul.mubr.f32.gmra.mrb[0].mxu0 %v63
    %v136 = vpop.f32.mrb[0].mxu0
    %v137 = vadd.f32 %v56, %v136
    %v138 = vpop.f32.mrb[0].mxu0
    %139 = vdwg.mxu0
    %v140 = vxor.u32 %v132, 2147483648
    %v141 = vmul.f32 %v140, 1.442695
    %v142 = vpow.pop %v141
    %v143 = vadd.f32 %v142, 1.0
    %v144 = vrcp.pop %v143
    %v145 = vmul.f32 1.0, %v144
    %v146 = vtanh.pop %v132
    %v147 = vmul.f32 %v145, 0.0
    %149 = vrot.lane.b32.xlu0 %v146, 64
    %v150 = vpop.permute.xlu0 %149
    %v152 = vmul.f32 %v145, %v150
    %154 = vrot.lane.b32.xlu0 %v152, 32
    %v155 = vpop.permute.xlu0 %154
    %v157 = vadd.f32 %v147, %v155
    %v158 = vtanh.pop %v157
    %160 = vrot.lane.b32.xlu0 %v158, 64
    %v161 = vpop.permute.xlu0 %160
    %v163 = vmul.f32 %v145, %v161
    %165 = vrot.lane.b32.xlu0 %v163, 32
    %v166 = vpop.permute.xlu0 %165
    %vm168 = vcmask 261120
    %v169 = vsel %vm168, %v166, 0.0
    %vm170 = vcmask 523264
    %v172 = vsel %vm170, %v169, 0
    %174 = vmatprep.subr.mxu0 %v27
    %175 = vmatpush1.msra.mxu0 %v26
    %176 = vmatprep.subr.mxu0 %v29
    %177 = vmatpush1.msra.mxu0 %v28
    %178 = vmatprep.subr.mxu0 %v31
    %179 = vmatpush1.msra.mxu0 %v30
    %180 = vmatprep.subr.mxu0 %v33
    %181 = vmatpush1.msra.mxu0 %v32
    %182 = vmatprep.subr.mxu0 %v35
    %183 = vmatpush1.msra.mxu0 %v34
    %184 = vmatprep.subr.mxu0 %v37
    %185 = vmatpush1.msra.mxu0 %v36
    %186 = vmatprep.subr.mxu0 %v39
    %187 = vmatpush1.msra.mxu0 %v38
    %188 = vmatprep.subr.mxu0 %v41
    %189 = vmatpush1.msra.mxu0 %v40
    %190 = vmatprep.subr.mxu0 0.0
    %191 = vmatpush1.msra.mxu0 0.0
    %192 = vmatprep.subr.mxu0 0.0
    %193 = vmatpush1.msra.mxu0 0.0
    %194 = vmatprep.subr.mxu0 0.0
    %195 = vmatpush1.msra.mxu0 0.0
    %196 = vmatprep.subr.mxu0 0.0
    %197 = vmatpush1.msra.mxu0 0.0
    %198 = vmatprep.subr.mxu0 0.0
    %199 = vmatpush1.msra.mxu0 0.0
    %200 = vmatprep.subr.mxu0 0.0
    %201 = vmatpush1.msra.mxu0 0.0
    %202 = vmatprep.subr.mxu0 0.0
    %203 = vmatpush1.msra.mxu0 0.0
    %204 = vmatprep.subr.mxu0 0.0
    %205 = vmatpush1.msra.mxu0 0.0
    %206 = vmatprep.subr.mxu0 0.0
    %207 = vmatpush1.msra.mxu0 0.0
    %208 = vmatprep.subr.mxu0 0.0
    %209 = vmatpush1.msra.mxu0 0.0
    %210 = vmatprep.subr.mxu0 0.0
    %211 = vmatpush1.msra.mxu0 0.0
    %212 = vmatprep.subr.mxu0 0.0
    %213 = vmatpush1.msra.mxu0 0.0
    %214 = vmatprep.subr.mxu0 0.0
    %215 = vmatpush1.msra.mxu0 0.0
    %216 = vmatprep.subr.mxu0 0.0
    %217 = vmatpush1.msra.mxu0 0.0
    %218 = vmatprep.subr.mxu0 0.0
    %219 = vmatpush1.msra.mxu0 0.0
    %220 = vmatprep.subr.mxu0 0.0
    %221 = vmatpush1.msra.mxu0 0.0
    %222 = vmatprep.subr.mxu0 0.0
    %223 = vmatpush1.msra.mxu0 0.0
    %224 = vmatprep.subr.mxu0 0.0
    %225 = vmatpush1.msra.mxu0 0.0
    %226 = vmatprep.subr.mxu0 0.0
    %227 = vmatpush1.msra.mxu0 0.0
    %228 = vmatprep.subr.mxu0 0.0
    %229 = vmatpush1.msra.mxu0 0.0
    %230 = vmatprep.subr.mxu0 0.0
    %231 = vmatpush1.msra.mxu0 0.0
    %232 = vmatprep.subr.mxu0 0.0
    %233 = vmatpush1.msra.mxu0 0.0
    %234 = vmatprep.subr.mxu0 0.0
    %235 = vmatpush1.msra.mxu0 0.0
    %236 = vmatprep.subr.mxu0 0.0
    %237 = vmatpush1.msra.mxu0 0.0
    %238 = vmatprep.mubr.f32.mxu0 0.0
    %239 = vmatmul.mubr.f32.gmra.mrb[0].mxu0 %v172
    %v240 = vpop.f32.mrb[0].mxu0
    %v241 = vadd.f32 0.0, %v240
    %v242 = vpop.f32.mrb[0].mxu0
    %v243 = vadd.f32 0.0, %v242
    %244 = vdwg.mxu0
    %v246 = vlaneseq
    %v247 = vshrl.u32 %v246, 7
    %v248 = vsub.s32 0, %v247
    %v249 = vrot.slane %v47, %v248
    %v251 = vadd.f32 %v243, %v249
    %v253 = vrot.slane %v132, 2
    %v255 = vadd.f32 %v241, %v253
    %v256 = vxor.u32 %v255, 2147483648
    %v257 = vmul.f32 %v256, 1.442695
    %v258 = vpow.pop %v257
    %v259 = vadd.f32 %v258, 1.0
    %v260 = vrcp.pop %v259
    %v261 = vmul.f32 1.0, %v260
    %v262 = vtanh.pop %v255
    %v263 = vmul.f32 %v261, %v157
    %265 = vrot.lane.b32.xlu0 %v262, 64
    %v266 = vpop.permute.xlu0 %265
    %v268 = vmul.f32 %v261, %v266
    %270 = vrot.lane.b32.xlu0 %v268, 32
    %v271 = vpop.permute.xlu0 %270
    %v273 = vadd.f32 %v263, %v271
    %v274 = vtanh.pop %v273
    %276 = vrot.lane.b32.xlu0 %v274, 64
    %v277 = vpop.permute.xlu0 %276
    %v279 = vmul.f32 %v261, %v277
    %v280 = vxor.u32 %v251, 2147483648
    %v281 = vmul.f32 %v280, 1.442695
    %v282 = vpow.pop %v281
    %v283 = vadd.f32 %v282, 1.0
    %v284 = vrcp.pop %v283
    %v285 = vmul.f32 1.0, %v284
    %v286 = vtanh.pop %v251
    %v287 = vmul.f32 %v285, 0.0
    %289 = vrot.lane.b32.xlu0 %v286, 64
    %v290 = vpop.permute.xlu0 %289
    %v292 = vmul.f32 %v285, %v290
    %294 = vrot.lane.b32.xlu0 %v292, 32
    %v295 = vpop.permute.xlu0 %294
    %v297 = vadd.f32 %v287, %v295
    %v298 = vtanh.pop %v297
    %300 = vrot.lane.b32.xlu0 %v298, 64
    %v301 = vpop.permute.xlu0 %300
    %v303 = vmul.f32 %v285, %v301
    %305 = vrot.lane.b32.xlu0 %v279, 32
    %v306 = vpop.permute.xlu0 %305
    %309 = vrot.lane.b32.xlu0 %v303, 64
    %v310 = vpop.permute.xlu0 %309
    %v312 = vsel %vm168, %v306, %v310
    %v314 = vsel %vm170, %v312, 0
    %316 = vmatprep.subr.mxu0 %v27
    %317 = vmatpush1.msra.mxu0 %v26
    %318 = vmatprep.subr.mxu0 %v29
    %319 = vmatpush1.msra.mxu0 %v28
    %320 = vmatprep.subr.mxu0 %v31
    %321 = vmatpush1.msra.mxu0 %v30
    %322 = vmatprep.subr.mxu0 %v33
    %323 = vmatpush1.msra.mxu0 %v32
    %324 = vmatprep.subr.mxu0 %v35
    %325 = vmatpush1.msra.mxu0 %v34
    %326 = vmatprep.subr.mxu0 %v37
    %327 = vmatpush1.msra.mxu0 %v36
    %328 = vmatprep.subr.mxu0 %v39
    %329 = vmatpush1.msra.mxu0 %v38
    %330 = vmatprep.subr.mxu0 %v41
    %331 = vmatpush1.msra.mxu0 %v40
    %332 = vmatprep.subr.mxu0 0.0
    %333 = vmatpush1.msra.mxu0 0.0
    %334 = vmatprep.subr.mxu0 0.0
    %335 = vmatpush1.msra.mxu0 0.0
    %336 = vmatprep.subr.mxu0 0.0
    %337 = vmatpush1.msra.mxu0 0.0
    %338 = vmatprep.subr.mxu0 0.0
    %339 = vmatpush1.msra.mxu0 0.0
    %340 = vmatprep.subr.mxu0 0.0
    %341 = vmatpush1.msra.mxu0 0.0
    %342 = vmatprep.subr.mxu0 0.0
    %343 = vmatpush1.msra.mxu0 0.0
    %344 = vmatprep.subr.mxu0 0.0
    %345 = vmatpush1.msra.mxu0 0.0
    %346 = vmatprep.subr.mxu0 0.0
    %347 = vmatpush1.msra.mxu0 0.0
    %348 = vmatprep.subr.mxu0 0.0
    %349 = vmatpush1.msra.mxu0 0.0
    %350 = vmatprep.subr.mxu0 0.0
    %351 = vmatpush1.msra.mxu0 0.0
    %352 = vmatprep.subr.mxu0 0.0
    %353 = vmatpush1.msra.mxu0 0.0
    %354 = vmatprep.subr.mxu0 0.0
    %355 = vmatpush1.msra.mxu0 0.0
    %356 = vmatprep.subr.mxu0 0.0
    %357 = vmatpush1.msra.mxu0 0.0
    %358 = vmatprep.subr.mxu0 0.0
    %359 = vmatpush1.msra.mxu0 0.0
    %360 = vmatprep.subr.mxu0 0.0
    %361 = vmatpush1.msra.mxu0 0.0
    %362 = vmatprep.subr.mxu0 0.0
    %363 = vmatpush1.msra.mxu0 0.0
    %364 = vmatprep.subr.mxu0 0.0
    %365 = vmatpush1.msra.mxu0 0.0
    %366 = vmatprep.subr.mxu0 0.0
    %367 = vmatpush1.msra.mxu0 0.0
    %368 = vmatprep.subr.mxu0 0.0
    %369 = vmatpush1.msra.mxu0 0.0
    %370 = vmatprep.subr.mxu0 0.0
    %371 = vmatpush1.msra.mxu0 0.0
    %372 = vmatprep.subr.mxu0 0.0
    %373 = vmatpush1.msra.mxu0 0.0
    %374 = vmatprep.subr.mxu0 0.0
    %375 = vmatpush1.msra.mxu0 0.0
    %376 = vmatprep.subr.mxu0 0.0
    %377 = vmatpush1.msra.mxu0 0.0
    %378 = vmatprep.subr.mxu0 0.0
    %379 = vmatpush1.msra.mxu0 0.0
    %380 = vmatprep.mubr.f32.mxu0 0.0
    %381 = vmatmul.mubr.f32.gmra.mrb[0].mxu0 %v314
    %v382 = vpop.f32.mrb[0].mxu0
    %v383 = vadd.f32 0.0, %v382
    %v384 = vpop.f32.mrb[0].mxu0
    %v385 = vadd.f32 0.0, %v384
    %386 = vdwg.mxu0
    %v387 = vadd.f32 %v385, %v249
    %v388 = vrot.slane %v132, 4
    %v390 = vadd.f32 %v383, %v388
    %v391 = vxor.u32 %v390, 2147483648
    %v392 = vmul.f32 %v391, 1.442695
    %v393 = vpow.pop %v392
    %v394 = vadd.f32 %v393, 1.0
    %v395 = vrcp.pop %v394
    %v396 = vmul.f32 1.0, %v395
    %v397 = vtanh.pop %v390
    %v398 = vmul.f32 %v396, %v273
    %400 = vrot.lane.b32.xlu0 %v397, 64
    %v401 = vpop.permute.xlu0 %400
    %v403 = vmul.f32 %v396, %v401
    %405 = vrot.lane.b32.xlu0 %v403, 32
    %v406 = vpop.permute.xlu0 %405
    %v408 = vadd.f32 %v398, %v406
    %v409 = vtanh.pop %v408
    %411 = vrot.lane.b32.xlu0 %v409, 64
    %v412 = vpop.permute.xlu0 %411
    %v414 = vmul.f32 %v396, %v412
    %v415 = vxor.u32 %v387, 2147483648
    %v416 = vmul.f32 %v415, 1.442695
    %v417 = vpow.pop %v416
    %v418 = vadd.f32 %v417, 1.0
    %v419 = vrcp.pop %v418
    %v420 = vmul.f32 1.0, %v419
    %v421 = vtanh.pop %v387
    %v422 = vmul.f32 %v420, %v297
    %424 = vrot.lane.b32.xlu0 %v421, 64
    %v425 = vpop.permute.xlu0 %424
    %v427 = vmul.f32 %v420, %v425
    %429 = vrot.lane.b32.xlu0 %v427, 32
    %v430 = vpop.permute.xlu0 %429
    %v432 = vadd.f32 %v422, %v430
    %v433 = vtanh.pop %v432
    %435 = vrot.lane.b32.xlu0 %v433, 64
    %v436 = vpop.permute.xlu0 %435
    %v438 = vmul.f32 %v420, %v436
    %440 = vrot.lane.b32.xlu0 %v414, 32
    %v441 = vpop.permute.xlu0 %440
    %444 = vrot.lane.b32.xlu0 %v438, 64
    %v445 = vpop.permute.xlu0 %444
    %v447 = vsel %vm168, %v441, %v445
    %v449 = vsel %vm170, %v447, 0
    %451 = vmatprep.subr.mxu0 %v27
    %452 = vmatpush1.msra.mxu0 %v26
    %453 = vmatprep.subr.mxu0 %v29
    %454 = vmatpush1.msra.mxu0 %v28
    %455 = vmatprep.subr.mxu0 %v31
    %456 = vmatpush1.msra.mxu0 %v30
    %457 = vmatprep.subr.mxu0 %v33
    %458 = vmatpush1.msra.mxu0 %v32
    %459 = vmatprep.subr.mxu0 %v35
    %460 = vmatpush1.msra.mxu0 %v34
    %461 = vmatprep.subr.mxu0 %v37
    %462 = vmatpush1.msra.mxu0 %v36
    %463 = vmatprep.subr.mxu0 %v39
    %464 = vmatpush1.msra.mxu0 %v38
    %465 = vmatprep.subr.mxu0 %v41
    %466 = vmatpush1.msra.mxu0 %v40
    %467 = vmatprep.subr.mxu0 0.0
    %468 = vmatpush1.msra.mxu0 0.0
    %469 = vmatprep.subr.mxu0 0.0
    %470 = vmatpush1.msra.mxu0 0.0
    %471 = vmatprep.subr.mxu0 0.0
    %472 = vmatpush1.msra.mxu0 0.0
    %473 = vmatprep.subr.mxu0 0.0
    %474 = vmatpush1.msra.mxu0 0.0
    %475 = vmatprep.subr.mxu0 0.0
    %476 = vmatpush1.msra.mxu0 0.0
    %477 = vmatprep.subr.mxu0 0.0
    %478 = vmatpush1.msra.mxu0 0.0
    %479 = vmatprep.subr.mxu0 0.0
    %480 = vmatpush1.msra.mxu0 0.0
    %481 = vmatprep.subr.mxu0 0.0
    %482 = vmatpush1.msra.mxu0 0.0
    %483 = vmatprep.subr.mxu0 0.0
    %484 = vmatpush1.msra.mxu0 0.0
    %485 = vmatprep.subr.mxu0 0.0
    %486 = vmatpush1.msra.mxu0 0.0
    %487 = vmatprep.subr.mxu0 0.0
    %488 = vmatpush1.msra.mxu0 0.0
    %489 = vmatprep.subr.mxu0 0.0
    %490 = vmatpush1.msra.mxu0 0.0
    %491 = vmatprep.subr.mxu0 0.0
    %492 = vmatpush1.msra.mxu0 0.0
    %493 = vmatprep.subr.mxu0 0.0
    %494 = vmatpush1.msra.mxu0 0.0
    %495 = vmatprep.subr.mxu0 0.0
    %496 = vmatpush1.msra.mxu0 0.0
    %497 = vmatprep.subr.mxu0 0.0
    %498 = vmatpush1.msra.mxu0 0.0
    %499 = vmatprep.subr.mxu0 0.0
    %500 = vmatpush1.msra.mxu0 0.0
    %501 = vmatprep.subr.mxu0 0.0
    %502 = vmatpush1.msra.mxu0 0.0
    %503 = vmatprep.subr.mxu0 0.0
    %504 = vmatpush1.msra.mxu0 0.0
    %505 = vmatprep.subr.mxu0 0.0
    %506 = vmatpush1.msra.mxu0 0.0
    %507 = vmatprep.subr.mxu0 0.0
    %508 = vmatpush1.msra.mxu0 0.0
    %509 = vmatprep.subr.mxu0 0.0
    %510 = vmatpush1.msra.mxu0 0.0
    %511 = vmatprep.subr.mxu0 0.0
    %512 = vmatpush1.msra.mxu0 0.0
    %513 = vmatprep.subr.mxu0 0.0
    %514 = vmatpush1.msra.mxu0 0.0
    %515 = vmatprep.mubr.f32.mxu0 0.0
    %516 = vmatmul.mubr.f32.gmra.mrb[0].mxu0 %v449
    %v517 = vpop.f32.mrb[0].mxu0
    %v518 = vadd.f32 0.0, %v517
    %v519 = vpop.f32.mrb[0].mxu0
    %v520 = vadd.f32 0.0, %v519
    %521 = vdwg.mxu0
    %v522 = vadd.f32 %v520, %v249
    %v523 = vrot.slane %v132, 6
    %v525 = vadd.f32 %v518, %v523
    %v526 = vxor.u32 %v525, 2147483648
    %v527 = vmul.f32 %v526, 1.442695
    %v528 = vpow.pop %v527
    %v529 = vadd.f32 %v528, 1.0
    %v530 = vrcp.pop %v529
    %v531 = vmul.f32 1.0, %v530
    %v532 = vtanh.pop %v525
    %v533 = vmul.f32 %v531, %v408
    %535 = vrot.lane.b32.xlu0 %v532, 64
    %v536 = vpop.permute.xlu0 %535
    %v538 = vmul.f32 %v531, %v536
    %540 = vrot.lane.b32.xlu0 %v538, 32
    %v541 = vpop.permute.xlu0 %540
    %v543 = vadd.f32 %v533, %v541
    %v544 = vtanh.pop %v543
    %546 = vrot.lane.b32.xlu0 %v544, 64
    %v547 = vpop.permute.xlu0 %546
    %v549 = vmul.f32 %v531, %v547
    %v550 = vxor.u32 %v522, 2147483648
    %v551 = vmul.f32 %v550, 1.442695
    %v552 = vpow.pop %v551
    %v553 = vadd.f32 %v552, 1.0
    %v554 = vrcp.pop %v553
    %v555 = vmul.f32 1.0, %v554
    %v556 = vtanh.pop %v522
    %v557 = vmul.f32 %v555, %v432
    %559 = vrot.lane.b32.xlu0 %v556, 64
    %v560 = vpop.permute.xlu0 %559
    %v562 = vmul.f32 %v555, %v560
    %564 = vrot.lane.b32.xlu0 %v562, 32
    %v565 = vpop.permute.xlu0 %564
    %v567 = vadd.f32 %v557, %v565
    %v568 = vtanh.pop %v567
    %570 = vrot.lane.b32.xlu0 %v568, 64
    %v571 = vpop.permute.xlu0 %570
    %v573 = vmul.f32 %v555, %v571
    %575 = vrot.lane.b32.xlu0 %v549, 32
    %v576 = vpop.permute.xlu0 %575
    %579 = vrot.lane.b32.xlu0 %v573, 64
    %v580 = vpop.permute.xlu0 %579
    %v582 = vsel %vm168, %v576, %v580
    %v584 = vsel %vm170, %v582, 0
    %586 = vmatprep.subr.mxu0 %v27
    %587 = vmatpush1.msra.mxu0 %v26
    %588 = vmatprep.subr.mxu0 %v29
    %589 = vmatpush1.msra.mxu0 %v28
    %590 = vmatprep.subr.mxu0 %v31
    %591 = vmatpush1.msra.mxu0 %v30
    %592 = vmatprep.subr.mxu0 %v33
    %593 = vmatpush1.msra.mxu0 %v32
    %594 = vmatprep.subr.mxu0 %v35
    %595 = vmatpush1.msra.mxu0 %v34
    %596 = vmatprep.subr.mxu0 %v37
    %597 = vmatpush1.msra.mxu0 %v36
    %598 = vmatprep.subr.mxu0 %v39
    %599 = vmatpush1.msra.mxu0 %v38
    %600 = vmatprep.subr.mxu0 %v41
    %601 = vmatpush1.msra.mxu0 %v40
    %602 = vmatprep.subr.mxu0 0.0
    %603 = vmatpush1.msra.mxu0 0.0
    %604 = vmatprep.subr.mxu0 0.0
    %605 = vmatpush1.msra.mxu0 0.0
    %606 = vmatprep.subr.mxu0 0.0
    %607 = vmatpush1.msra.mxu0 0.0
    %608 = vmatprep.subr.mxu0 0.0
    %609 = vmatpush1.msra.mxu0 0.0
    %610 = vmatprep.subr.mxu0 0.0
    %611 = vmatpush1.msra.mxu0 0.0
    %612 = vmatprep.subr.mxu0 0.0
    %613 = vmatpush1.msra.mxu0 0.0
    %614 = vmatprep.subr.mxu0 0.0
    %615 = vmatpush1.msra.mxu0 0.0
    %616 = vmatprep.subr.mxu0 0.0
    %617 = vmatpush1.msra.mxu0 0.0
    %618 = vmatprep.subr.mxu0 0.0
    %619 = vmatpush1.msra.mxu0 0.0
    %620 = vmatprep.subr.mxu0 0.0
    %621 = vmatpush1.msra.mxu0 0.0
    %622 = vmatprep.subr.mxu0 0.0
    %623 = vmatpush1.msra.mxu0 0.0
    %624 = vmatprep.subr.mxu0 0.0
    %625 = vmatpush1.msra.mxu0 0.0
    %626 = vmatprep.subr.mxu0 0.0
    %627 = vmatpush1.msra.mxu0 0.0
    %628 = vmatprep.subr.mxu0 0.0
    %629 = vmatpush1.msra.mxu0 0.0
    %630 = vmatprep.subr.mxu0 0.0
    %631 = vmatpush1.msra.mxu0 0.0
    %632 = vmatprep.subr.mxu0 0.0
    %633 = vmatpush1.msra.mxu0 0.0
    %634 = vmatprep.subr.mxu0 0.0
    %635 = vmatpush1.msra.mxu0 0.0
    %636 = vmatprep.subr.mxu0 0.0
    %637 = vmatpush1.msra.mxu0 0.0
    %638 = vmatprep.subr.mxu0 0.0
    %639 = vmatpush1.msra.mxu0 0.0
    %640 = vmatprep.subr.mxu0 0.0
    %641 = vmatpush1.msra.mxu0 0.0
    %642 = vmatprep.subr.mxu0 0.0
    %643 = vmatpush1.msra.mxu0 0.0
    %644 = vmatprep.subr.mxu0 0.0
    %645 = vmatpush1.msra.mxu0 0.0
    %646 = vmatprep.subr.mxu0 0.0
    %647 = vmatpush1.msra.mxu0 0.0
    %648 = vmatprep.subr.mxu0 0.0
    %649 = vmatpush1.msra.mxu0 0.0
    %650 = vmatprep.mubr.f32.mxu0 0.0
    %651 = vmatmul.mubr.f32.gmra.mrb[0].mxu0 %v584
    %v652 = vpop.f32.mrb[0].mxu0
    %v653 = vadd.f32 0.0, %v652
    %v654 = vpop.f32.mrb[0].mxu0
    %v655 = vadd.f32 0.0, %v654
    %656 = vdwg.mxu0
    %v657 = vadd.f32 %v655, %v249
    %v658 = vadd.f32 %v653, %v137
    %v659 = vxor.u32 %v658, 2147483648
    %v660 = vmul.f32 %v659, 1.442695
    %v661 = vpow.pop %v660
    %v662 = vadd.f32 %v661, 1.0
    %v663 = vrcp.pop %v662
    %v664 = vmul.f32 1.0, %v663
    %v665 = vtanh.pop %v658
    %v666 = vmul.f32 %v664, %v543
    %668 = vrot.lane.b32.xlu0 %v665, 64
    %v669 = vpop.permute.xlu0 %668
    %v671 = vmul.f32 %v664, %v669
    %673 = vrot.lane.b32.xlu0 %v671, 32
    %v674 = vpop.permute.xlu0 %673
    %v676 = vadd.f32 %v666, %v674
    %v677 = vtanh.pop %v676
    %679 = vrot.lane.b32.xlu0 %v677, 64
    %v680 = vpop.permute.xlu0 %679
    %v682 = vmul.f32 %v664, %v680
    %v683 = vxor.u32 %v657, 2147483648
    %v684 = vmul.f32 %v683, 1.442695
    %v685 = vpow.pop %v684
    %v686 = vadd.f32 %v685, 1.0
    %v687 = vrcp.pop %v686
    %v688 = vmul.f32 1.0, %v687
    %v689 = vtanh.pop %v657
    %v690 = vmul.f32 %v688, %v567
    %692 = vrot.lane.b32.xlu0 %v689, 64
    %v693 = vpop.permute.xlu0 %692
    %v695 = vmul.f32 %v688, %v693
    %697 = vrot.lane.b32.xlu0 %v695, 32
    %v698 = vpop.permute.xlu0 %697
    %v700 = vadd.f32 %v690, %v698
    %v701 = vtanh.pop %v700
    %703 = vrot.lane.b32.xlu0 %v701, 64
    %v704 = vpop.permute.xlu0 %703
    %v706 = vmul.f32 %v688, %v704
    %708 = vrot.lane.b32.xlu0 %v682, 32
    %v709 = vpop.permute.xlu0 %708
    %712 = vrot.lane.b32.xlu0 %v706, 64
    %v713 = vpop.permute.xlu0 %712
    %v715 = vsel %vm168, %v709, %v713
    %v717 = vsel %vm170, %v715, 0
    %719 = vmatprep.subr.mxu0 %v27
    %720 = vmatpush1.msra.mxu0 %v26
    %721 = vmatprep.subr.mxu0 %v29
    %722 = vmatpush1.msra.mxu0 %v28
    %723 = vmatprep.subr.mxu0 %v31
    %724 = vmatpush1.msra.mxu0 %v30
    %725 = vmatprep.subr.mxu0 %v33
    %726 = vmatpush1.msra.mxu0 %v32
    %727 = vmatprep.subr.mxu0 %v35
    %728 = vmatpush1.msra.mxu0 %v34
    %729 = vmatprep.subr.mxu0 %v37
    %730 = vmatpush1.msra.mxu0 %v36
    %731 = vmatprep.subr.mxu0 %v39
    %732 = vmatpush1.msra.mxu0 %v38
    %733 = vmatprep.subr.mxu0 %v41
    %734 = vmatpush1.msra.mxu0 %v40
    %735 = vmatprep.subr.mxu0 0.0
    %736 = vmatpush1.msra.mxu0 0.0
    %737 = vmatprep.subr.mxu0 0.0
    %738 = vmatpush1.msra.mxu0 0.0
    %739 = vmatprep.subr.mxu0 0.0
    %740 = vmatpush1.msra.mxu0 0.0
    %741 = vmatprep.subr.mxu0 0.0
    %742 = vmatpush1.msra.mxu0 0.0
    %743 = vmatprep.subr.mxu0 0.0
    %744 = vmatpush1.msra.mxu0 0.0
    %745 = vmatprep.subr.mxu0 0.0
    %746 = vmatpush1.msra.mxu0 0.0
    %747 = vmatprep.subr.mxu0 0.0
    %748 = vmatpush1.msra.mxu0 0.0
    %749 = vmatprep.subr.mxu0 0.0
    %750 = vmatpush1.msra.mxu0 0.0
    %751 = vmatprep.subr.mxu0 0.0
    %752 = vmatpush1.msra.mxu0 0.0
    %753 = vmatprep.subr.mxu0 0.0
    %754 = vmatpush1.msra.mxu0 0.0
    %755 = vmatprep.subr.mxu0 0.0
    %756 = vmatpush1.msra.mxu0 0.0
    %757 = vmatprep.subr.mxu0 0.0
    %758 = vmatpush1.msra.mxu0 0.0
    %759 = vmatprep.subr.mxu0 0.0
    %760 = vmatpush1.msra.mxu0 0.0
    %761 = vmatprep.subr.mxu0 0.0
    %762 = vmatpush1.msra.mxu0 0.0
    %763 = vmatprep.subr.mxu0 0.0
    %764 = vmatpush1.msra.mxu0 0.0
    %765 = vmatprep.subr.mxu0 0.0
    %766 = vmatpush1.msra.mxu0 0.0
    %767 = vmatprep.subr.mxu0 0.0
    %768 = vmatpush1.msra.mxu0 0.0
    %769 = vmatprep.subr.mxu0 0.0
    %770 = vmatpush1.msra.mxu0 0.0
    %771 = vmatprep.subr.mxu0 0.0
    %772 = vmatpush1.msra.mxu0 0.0
    %773 = vmatprep.subr.mxu0 0.0
    %774 = vmatpush1.msra.mxu0 0.0
    %775 = vmatprep.subr.mxu0 0.0
    %776 = vmatpush1.msra.mxu0 0.0
    %777 = vmatprep.subr.mxu0 0.0
    %778 = vmatpush1.msra.mxu0 0.0
    %779 = vmatprep.subr.mxu0 0.0
    %780 = vmatpush1.msra.mxu0 0.0
    %781 = vmatprep.subr.mxu0 0.0
    %782 = vmatpush1.msra.mxu0 0.0
    %783 = vmatprep.mubr.f32.mxu0 0.0
    %784 = vmatmul.mubr.f32.gmra.mrb[0].mxu0 %v717
    %v785 = vpop.f32.mrb[0].mxu0
    %v786 = vadd.f32 0.0, %v785
    %v787 = vpop.f32.mrb[0].mxu0
    %v788 = vadd.f32 0.0, %v787
    %789 = vdwg.mxu0
    %v790 = vadd.f32 %v788, %v249
    %v792 = vrot.slane %v137, 2
    %v794 = vadd.f32 %v786, %v792
    %v795 = vxor.u32 %v794, 2147483648
    %v796 = vmul.f32 %v795, 1.442695
    %v797 = vpow.pop %v796
    %v798 = vadd.f32 %v797, 1.0
    %v799 = vrcp.pop %v798
    %v800 = vmul.f32 1.0, %v799
    %v801 = vtanh.pop %v794
    %v802 = vmul.f32 %v800, %v676
    %804 = vrot.lane.b32.xlu0 %v801, 64
    %v805 = vpop.permute.xlu0 %804
    %v807 = vmul.f32 %v800, %v805
    %809 = vrot.lane.b32.xlu0 %v807, 32
    %v810 = vpop.permute.xlu0 %809
    %v812 = vadd.f32 %v802, %v810
    %v813 = vtanh.pop %v812
    %815 = vrot.lane.b32.xlu0 %v813, 64
    %v816 = vpop.permute.xlu0 %815
    %v818 = vmul.f32 %v800, %v816
    %v819 = vxor.u32 %v790, 2147483648
    %v820 = vmul.f32 %v819, 1.442695
    %v821 = vpow.pop %v820
    %v822 = vadd.f32 %v821, 1.0
    %v823 = vrcp.pop %v822
    %v824 = vmul.f32 1.0, %v823
    %v825 = vtanh.pop %v790
    %v826 = vmul.f32 %v824, %v700
    %828 = vrot.lane.b32.xlu0 %v825, 64
    %v829 = vpop.permute.xlu0 %828
    %v831 = vmul.f32 %v824, %v829
    %833 = vrot.lane.b32.xlu0 %v831, 32
    %v834 = vpop.permute.xlu0 %833
    %v836 = vadd.f32 %v826, %v834
    %v837 = vtanh.pop %v836
    %839 = vrot.lane.b32.xlu0 %v837, 64
    %v840 = vpop.permute.xlu0 %839
    %v842 = vmul.f32 %v824, %v840
    %844 = vrot.lane.b32.xlu0 %v818, 32
    %v845 = vpop.permute.xlu0 %844
    %848 = vrot.lane.b32.xlu0 %v842, 64
    %v849 = vpop.permute.xlu0 %848
    %v851 = vsel %vm168, %v845, %v849
    %v853 = vsel %vm170, %v851, 0
    %855 = vmatprep.subr.mxu0 %v27
    %856 = vmatpush1.msra.mxu0 %v26
    %857 = vmatprep.subr.mxu0 %v29
    %858 = vmatpush1.msra.mxu0 %v28
    %859 = vmatprep.subr.mxu0 %v31
    %860 = vmatpush1.msra.mxu0 %v30
    %861 = vmatprep.subr.mxu0 %v33
    %862 = vmatpush1.msra.mxu0 %v32
    %863 = vmatprep.subr.mxu0 %v35
    %864 = vmatpush1.msra.mxu0 %v34
    %865 = vmatprep.subr.mxu0 %v37
    %866 = vmatpush1.msra.mxu0 %v36
    %867 = vmatprep.subr.mxu0 %v39
    %868 = vmatpush1.msra.mxu0 %v38
    %869 = vmatprep.subr.mxu0 %v41
    %870 = vmatpush1.msra.mxu0 %v40
    %871 = vmatprep.subr.mxu0 0.0
    %872 = vmatpush1.msra.mxu0 0.0
    %873 = vmatprep.subr.mxu0 0.0
    %874 = vmatpush1.msra.mxu0 0.0
    %875 = vmatprep.subr.mxu0 0.0
    %876 = vmatpush1.msra.mxu0 0.0
    %877 = vmatprep.subr.mxu0 0.0
    %878 = vmatpush1.msra.mxu0 0.0
    %879 = vmatprep.subr.mxu0 0.0
    %880 = vmatpush1.msra.mxu0 0.0
    %881 = vmatprep.subr.mxu0 0.0
    %882 = vmatpush1.msra.mxu0 0.0
    %883 = vmatprep.subr.mxu0 0.0
    %884 = vmatpush1.msra.mxu0 0.0
    %885 = vmatprep.subr.mxu0 0.0
    %886 = vmatpush1.msra.mxu0 0.0
    %887 = vmatprep.subr.mxu0 0.0
    %888 = vmatpush1.msra.mxu0 0.0
    %889 = vmatprep.subr.mxu0 0.0
    %890 = vmatpush1.msra.mxu0 0.0
    %891 = vmatprep.subr.mxu0 0.0
    %892 = vmatpush1.msra.mxu0 0.0
    %893 = vmatprep.subr.mxu0 0.0
    %894 = vmatpush1.msra.mxu0 0.0
    %895 = vmatprep.subr.mxu0 0.0
    %896 = vmatpush1.msra.mxu0 0.0
    %897 = vmatprep.subr.mxu0 0.0
    %898 = vmatpush1.msra.mxu0 0.0
    %899 = vmatprep.subr.mxu0 0.0
    %900 = vmatpush1.msra.mxu0 0.0
    %901 = vmatprep.subr.mxu0 0.0
    %902 = vmatpush1.msra.mxu0 0.0
    %903 = vmatprep.subr.mxu0 0.0
    %904 = vmatpush1.msra.mxu0 0.0
    %905 = vmatprep.subr.mxu0 0.0
    %906 = vmatpush1.msra.mxu0 0.0
    %907 = vmatprep.subr.mxu0 0.0
    %908 = vmatpush1.msra.mxu0 0.0
    %909 = vmatprep.subr.mxu0 0.0
    %910 = vmatpush1.msra.mxu0 0.0
    %911 = vmatprep.subr.mxu0 0.0
    %912 = vmatpush1.msra.mxu0 0.0
    %913 = vmatprep.subr.mxu0 0.0
    %914 = vmatpush1.msra.mxu0 0.0
    %915 = vmatprep.subr.mxu0 0.0
    %916 = vmatpush1.msra.mxu0 0.0
    %917 = vmatprep.subr.mxu0 0.0
    %918 = vmatpush1.msra.mxu0 0.0
    %919 = vmatprep.mubr.f32.mxu0 0.0
    %920 = vmatmul.mubr.f32.gmra.mrb[0].mxu0 %v853
    %v921 = vpop.f32.mrb[0].mxu0
    %v922 = vadd.f32 0.0, %v921
    %v923 = vpop.f32.mrb[0].mxu0
    %v924 = vadd.f32 0.0, %v923
    %925 = vdwg.mxu0
    %v926 = vadd.f32 %v924, %v249
    %v927 = vrot.slane %v137, 4
    %v929 = vadd.f32 %v922, %v927
    %v930 = vxor.u32 %v929, 2147483648
    %v931 = vmul.f32 %v930, 1.442695
    %v932 = vpow.pop %v931
    %v933 = vadd.f32 %v932, 1.0
    %v934 = vrcp.pop %v933
    %v935 = vmul.f32 1.0, %v934
    %v936 = vtanh.pop %v929
    %v937 = vmul.f32 %v935, %v812
    %939 = vrot.lane.b32.xlu0 %v936, 64
    %v940 = vpop.permute.xlu0 %939
    %v942 = vmul.f32 %v935, %v940
    %944 = vrot.lane.b32.xlu0 %v942, 32
    %v945 = vpop.permute.xlu0 %944
    %v947 = vadd.f32 %v937, %v945
    %v948 = vtanh.pop %v947
    %950 = vrot.lane.b32.xlu0 %v948, 64
    %v951 = vpop.permute.xlu0 %950
    %v953 = vmul.f32 %v935, %v951
    %v954 = vxor.u32 %v926, 2147483648
    %v955 = vmul.f32 %v954, 1.442695
    %v956 = vpow.pop %v955
    %v957 = vadd.f32 %v956, 1.0
    %v958 = vrcp.pop %v957
    %v959 = vmul.f32 1.0, %v958
    %v960 = vtanh.pop %v926
    %v961 = vmul.f32 %v959, %v836
    %963 = vrot.lane.b32.xlu0 %v960, 64
    %v964 = vpop.permute.xlu0 %963
    %v966 = vmul.f32 %v959, %v964
    %968 = vrot.lane.b32.xlu0 %v966, 32
    %v969 = vpop.permute.xlu0 %968
    %v971 = vadd.f32 %v961, %v969
    %v972 = vtanh.pop %v971
    %974 = vrot.lane.b32.xlu0 %v972, 64
    %v975 = vpop.permute.xlu0 %974
    %v977 = vmul.f32 %v959, %v975
    %979 = vrot.lane.b32.xlu0 %v953, 32
    %v980 = vpop.permute.xlu0 %979
    %983 = vrot.lane.b32.xlu0 %v977, 64
    %v984 = vpop.permute.xlu0 %983
    %v986 = vsel %vm168, %v980, %v984
    %v988 = vsel %vm170, %v986, 0
    %990 = vmatprep.subr.mxu0 %v27
    %991 = vmatpush1.msra.mxu0 %v26
    %992 = vmatprep.subr.mxu0 %v29
    %993 = vmatpush1.msra.mxu0 %v28
    %994 = vmatprep.subr.mxu0 %v31
    %995 = vmatpush1.msra.mxu0 %v30
    %996 = vmatprep.subr.mxu0 %v33
    %997 = vmatpush1.msra.mxu0 %v32
    %998 = vmatprep.subr.mxu0 %v35
    %999 = vmatpush1.msra.mxu0 %v34
    %1000 = vmatprep.subr.mxu0 %v37
    %1001 = vmatpush1.msra.mxu0 %v36
    %1002 = vmatprep.subr.mxu0 %v39
    %1003 = vmatpush1.msra.mxu0 %v38
    %1004 = vmatprep.subr.mxu0 %v41
    %1005 = vmatpush1.msra.mxu0 %v40
    %1006 = vmatprep.subr.mxu0 0.0
    %1007 = vmatpush1.msra.mxu0 0.0
    %1008 = vmatprep.subr.mxu0 0.0
    %1009 = vmatpush1.msra.mxu0 0.0
    %1010 = vmatprep.subr.mxu0 0.0
    %1011 = vmatpush1.msra.mxu0 0.0
    %1012 = vmatprep.subr.mxu0 0.0
    %1013 = vmatpush1.msra.mxu0 0.0
    %1014 = vmatprep.subr.mxu0 0.0
    %1015 = vmatpush1.msra.mxu0 0.0
    %1016 = vmatprep.subr.mxu0 0.0
    %1017 = vmatpush1.msra.mxu0 0.0
    %1018 = vmatprep.subr.mxu0 0.0
    %1019 = vmatpush1.msra.mxu0 0.0
    %1020 = vmatprep.subr.mxu0 0.0
    %1021 = vmatpush1.msra.mxu0 0.0
    %1022 = vmatprep.subr.mxu0 0.0
    %1023 = vmatpush1.msra.mxu0 0.0
    %1024 = vmatprep.subr.mxu0 0.0
    %1025 = vmatpush1.msra.mxu0 0.0
    %1026 = vmatprep.subr.mxu0 0.0
    %1027 = vmatpush1.msra.mxu0 0.0
    %1028 = vmatprep.subr.mxu0 0.0
    %1029 = vmatpush1.msra.mxu0 0.0
    %1030 = vmatprep.subr.mxu0 0.0
    %1031 = vmatpush1.msra.mxu0 0.0
    %1032 = vmatprep.subr.mxu0 0.0
    %1033 = vmatpush1.msra.mxu0 0.0
    %1034 = vmatprep.subr.mxu0 0.0
    %1035 = vmatpush1.msra.mxu0 0.0
    %1036 = vmatprep.subr.mxu0 0.0
    %1037 = vmatpush1.msra.mxu0 0.0
    %1038 = vmatprep.subr.mxu0 0.0
    %1039 = vmatpush1.msra.mxu0 0.0
    %1040 = vmatprep.subr.mxu0 0.0
    %1041 = vmatpush1.msra.mxu0 0.0
    %1042 = vmatprep.subr.mxu0 0.0
    %1043 = vmatpush1.msra.mxu0 0.0
    %1044 = vmatprep.subr.mxu0 0.0
    %1045 = vmatpush1.msra.mxu0 0.0
    %1046 = vmatprep.subr.mxu0 0.0
    %1047 = vmatpush1.msra.mxu0 0.0
    %1048 = vmatprep.subr.mxu0 0.0
    %1049 = vmatpush1.msra.mxu0 0.0
    %1050 = vmatprep.subr.mxu0 0.0
    %1051 = vmatpush1.msra.mxu0 0.0
    %1052 = vmatprep.subr.mxu0 0.0
    %1053 = vmatpush1.msra.mxu0 0.0
    %1054 = vmatprep.mubr.f32.mxu0 0.0
    %1055 = vmatmul.mubr.f32.gmra.mrb[0].mxu0 %v988
    %v1056 = vpop.f32.mrb[0].mxu0
    %v1057 = vadd.f32 0.0, %v1056
    %v1058 = vpop.f32.mrb[0].mxu0
    %v1059 = vadd.f32 0.0, %v1058
    %1060 = vdwg.mxu0
    %v1061 = vadd.f32 %v1059, %v249
    %v1062 = vrot.slane %v137, 6
    %v1064 = vadd.f32 %v1057, %v1062
    %v1065 = vxor.u32 %v1064, 2147483648
    %v1066 = vmul.f32 %v1065, 1.442695
    %v1067 = vpow.pop %v1066
    %v1068 = vadd.f32 %v1067, 1.0
    %v1069 = vrcp.pop %v1068
    %v1070 = vmul.f32 1.0, %v1069
    %v1071 = vtanh.pop %v1064
    %v1072 = vmul.f32 %v1070, %v947
    %1074 = vrot.lane.b32.xlu0 %v1071, 64
    %v1075 = vpop.permute.xlu0 %1074
    %v1077 = vmul.f32 %v1070, %v1075
    %1079 = vrot.lane.b32.xlu0 %v1077, 32
    %v1080 = vpop.permute.xlu0 %1079
    %v1082 = vadd.f32 %v1072, %v1080
    %v1083 = vtanh.pop %v1082
    %1085 = vrot.lane.b32.xlu0 %v1083, 64
    %v1086 = vpop.permute.xlu0 %1085
    %v1088 = vmul.f32 %v1070, %v1086
    %v1089 = vxor.u32 %v1061, 2147483648
    %v1090 = vmul.f32 %v1089, 1.442695
    %v1091 = vpow.pop %v1090
    %v1092 = vadd.f32 %v1091, 1.0
    %v1093 = vrcp.pop %v1092
    %v1094 = vmul.f32 1.0, %v1093
    %v1095 = vtanh.pop %v1061
    %v1096 = vmul.f32 %v1094, %v971
    %1098 = vrot.lane.b32.xlu0 %v1095, 64
    %v1099 = vpop.permute.xlu0 %1098
    %v1101 = vmul.f32 %v1094, %v1099
    %1103 = vrot.lane.b32.xlu0 %v1101, 32
    %v1104 = vpop.permute.xlu0 %1103
    %v1106 = vadd.f32 %v1096, %v1104
    %v1107 = vtanh.pop %v1106
    %1109 = vrot.lane.b32.xlu0 %v1107, 64
    %v1110 = vpop.permute.xlu0 %1109
    %v1112 = vmul.f32 %v1094, %v1110
    %1114 = vrot.lane.b32.xlu0 %v1088, 32
    %v1115 = vpop.permute.xlu0 %1114
    %1118 = vrot.lane.b32.xlu0 %v1112, 64
    %v1119 = vpop.permute.xlu0 %1118
    %v1121 = vsel %vm168, %v1115, %v1119
    %v1123 = vsel %vm170, %v1121, 0
    %1125 = vmatprep.subr.mxu0 %v27
    %1126 = vmatpush1.msra.mxu0 %v26
    %1127 = vmatprep.subr.mxu0 %v29
    %1128 = vmatpush1.msra.mxu0 %v28
    %1129 = vmatprep.subr.mxu0 %v31
    %1130 = vmatpush1.msra.mxu0 %v30
    %1131 = vmatprep.subr.mxu0 %v33
    %1132 = vmatpush1.msra.mxu0 %v32
    %1133 = vmatprep.subr.mxu0 %v35
    %1134 = vmatpush1.msra.mxu0 %v34
    %1135 = vmatprep.subr.mxu0 %v37
    %1136 = vmatpush1.msra.mxu0 %v36
    %1137 = vmatprep.subr.mxu0 %v39
    %1138 = vmatpush1.msra.mxu0 %v38
    %1139 = vmatprep.subr.mxu0 %v41
    %1140 = vmatpush1.msra.mxu0 %v40
    %1141 = vmatprep.subr.mxu0 0.0
    %1142 = vmatpush1.msra.mxu0 0.0
    %1143 = vmatprep.subr.mxu0 0.0
    %1144 = vmatpush1.msra.mxu0 0.0
    %1145 = vmatprep.subr.mxu0 0.0
    %1146 = vmatpush1.msra.mxu0 0.0
    %1147 = vmatprep.subr.mxu0 0.0
    %1148 = vmatpush1.msra.mxu0 0.0
    %1149 = vmatprep.subr.mxu0 0.0
    %1150 = vmatpush1.msra.mxu0 0.0
    %1151 = vmatprep.subr.mxu0 0.0
    %1152 = vmatpush1.msra.mxu0 0.0
    %1153 = vmatprep.subr.mxu0 0.0
    %1154 = vmatpush1.msra.mxu0 0.0
    %1155 = vmatprep.subr.mxu0 0.0
    %1156 = vmatpush1.msra.mxu0 0.0
    %1157 = vmatprep.subr.mxu0 0.0
    %1158 = vmatpush1.msra.mxu0 0.0
    %1159 = vmatprep.subr.mxu0 0.0
    %1160 = vmatpush1.msra.mxu0 0.0
    %1161 = vmatprep.subr.mxu0 0.0
    %1162 = vmatpush1.msra.mxu0 0.0
    %1163 = vmatprep.subr.mxu0 0.0
    %1164 = vmatpush1.msra.mxu0 0.0
    %1165 = vmatprep.subr.mxu0 0.0
    %1166 = vmatpush1.msra.mxu0 0.0
    %1167 = vmatprep.subr.mxu0 0.0
    %1168 = vmatpush1.msra.mxu0 0.0
    %1169 = vmatprep.subr.mxu0 0.0
    %1170 = vmatpush1.msra.mxu0 0.0
    %1171 = vmatprep.subr.mxu0 0.0
    %1172 = vmatpush1.msra.mxu0 0.0
    %1173 = vmatprep.subr.mxu0 0.0
    %1174 = vmatpush1.msra.mxu0 0.0
    %1175 = vmatprep.subr.mxu0 0.0
    %1176 = vmatpush1.msra.mxu0 0.0
    %1177 = vmatprep.subr.mxu0 0.0
    %1178 = vmatpush1.msra.mxu0 0.0
    %1179 = vmatprep.subr.mxu0 0.0
    %1180 = vmatpush1.msra.mxu0 0.0
    %1181 = vmatprep.subr.mxu0 0.0
    %1182 = vmatpush1.msra.mxu0 0.0
    %1183 = vmatprep.subr.mxu0 0.0
    %1184 = vmatpush1.msra.mxu0 0.0
    %1185 = vmatprep.subr.mxu0 0.0
    %1186 = vmatpush1.msra.mxu0 0.0
    %1187 = vmatprep.subr.mxu0 0.0
    %1188 = vmatpush1.msra.mxu0 0.0
    %1189 = vmatprep.mubr.f32.mxu0 0.0
    %1190 = vmatmul.mubr.f32.gmra.mrb[0].mxu0 %v1123
    %v1191 = vpop.f32.mrb[0].mxu0
    %v1192 = vpop.f32.mrb[0].mxu0
    %v1193 = vadd.f32 0.0, %v1192
    %1194 = vdwg.mxu0
    %v1195 = vadd.f32 %v1193, %v249
    %v1196 = vxor.u32 %v1195, 2147483648
    %v1197 = vmul.f32 %v1196, 1.442695
    %v1198 = vpow.pop %v1197
    %v1199 = vadd.f32 %v1198, 1.0
    %v1200 = vrcp.pop %v1199
    %v1201 = vmul.f32 1.0, %v1200
    %v1202 = vtanh.pop %v1195
    %v1203 = vmul.f32 %v1201, %v1106
    %1205 = vrot.lane.b32.xlu0 %v1202, 64
    %v1206 = vpop.permute.xlu0 %1205
    %v1208 = vmul.f32 %v1201, %v1206
    %1210 = vrot.lane.b32.xlu0 %v1208, 32
    %v1211 = vpop.permute.xlu0 %1210
    %v1213 = vadd.f32 %v1203, %v1211
    %v1214 = vtanh.pop %v1213
    %1216 = vrot.lane.b32.xlu0 %v1214, 64
    %v1217 = vpop.permute.xlu0 %1216
    %v1219 = vmul.f32 %v1201, %v1217
    %v1220 = vtanh.pop %v303
    %v1222 = vlaneseq
    %v1223 = vshrl.u32 %v1222, 7
    %v1224 = vsub.s32 0, %v1223
    %v1225 = vrot.slane %v49, %v1224
    %1226 = vrot.lane.b32.xlu0 %v1225, 96
    %v1227 = vpop.permute.xlu0 %1226
    %v1229 = vmul.f32 %v1220, %v1227
    %1231 = vrot.lane.b32.xlu0 %v1229, 32
    %v1232 = vpop.permute.xlu0 %1231
    %vm1234 = vcmask 254976
    %v1235 = vsel %vm1234, %v1232, 0.0
    %1236 = vadd.xlane.f32.xlu0 %v1235
    %v1237 = vpop.xlane.xlu0 %1236
    %v1238 = vtanh.pop %v438
    %v1239 = vmul.f32 %v1238, %v1227
    %1241 = vrot.lane.b32.xlu0 %v1239, 32
    %v1242 = vpop.permute.xlu0 %1241
    %v1244 = vsel %vm1234, %v1242, 0.0
    %1245 = vadd.xlane.f32.xlu0 %v1244
    %v1246 = vpop.xlane.xlu0 %1245
    %v1247 = vtanh.pop %v573
    %v1248 = vmul.f32 %v1247, %v1227
    %1250 = vrot.lane.b32.xlu0 %v1248, 32
    %v1251 = vpop.permute.xlu0 %1250
    %v1253 = vsel %vm1234, %v1251, 0.0
    %1254 = vadd.xlane.f32.xlu0 %v1253
    %v1255 = vpop.xlane.xlu0 %1254
    %v1256 = vtanh.pop %v706
    %v1257 = vmul.f32 %v1256, %v1227
    %1259 = vrot.lane.b32.xlu0 %v1257, 32
    %v1260 = vpop.permute.xlu0 %1259
    %v1262 = vsel %vm1234, %v1260, 0.0
    %1263 = vadd.xlane.f32.xlu0 %v1262
    %v1264 = vpop.xlane.xlu0 %1263
    %v1265 = vtanh.pop %v842
    %v1266 = vmul.f32 %v1265, %v1227
    %1268 = vrot.lane.b32.xlu0 %v1266, 32
    %v1269 = vpop.permute.xlu0 %1268
    %v1271 = vsel %vm1234, %v1269, 0.0
    %1272 = vadd.xlane.f32.xlu0 %v1271
    %v1273 = vpop.xlane.xlu0 %1272
    %v1274 = vtanh.pop %v977
    %v1275 = vmul.f32 %v1274, %v1227
    %1277 = vrot.lane.b32.xlu0 %v1275, 32
    %v1278 = vpop.permute.xlu0 %1277
    %v1280 = vsel %vm1234, %v1278, 0.0
    %1281 = vadd.xlane.f32.xlu0 %v1280
    %v1282 = vpop.xlane.xlu0 %1281
    %v1283 = vtanh.pop %v1112
    %v1284 = vmul.f32 %v1283, %v1227
    %1286 = vrot.lane.b32.xlu0 %v1284, 32
    %v1287 = vpop.permute.xlu0 %1286
    %v1289 = vsel %vm1234, %v1287, 0.0
    %1290 = vadd.xlane.f32.xlu0 %v1289
    %v1291 = vpop.xlane.xlu0 %1290
    %v1292 = vtanh.pop %v1219
    %v1293 = vmul.f32 %v1292, %v1227
    %1295 = vrot.lane.b32.xlu0 %v1293, 32
    %v1296 = vpop.permute.xlu0 %1295
    %v1298 = vsel %vm1234, %v1296, 0.0
    %1299 = vadd.xlane.f32.xlu0 %v1298
    %v1300 = vpop.xlane.xlu0 %1299
    %v1301 = vmax.f32 %v1237, %v1246
    %v1302 = vmax.f32 %v1301, %v1255
    %v1303 = vmax.f32 %v1302, %v1264
    %v1304 = vmax.f32 %v1303, %v1273
    %v1305 = vmax.f32 %v1304, %v1282
    %v1306 = vmax.f32 %v1305, %v1291
    %v1307 = vmax.f32 %v1306, %v1300
    %v1308 = vsub.f32 %v1237, %v1307
    %v1309 = vmul.f32 %v1308, 1.442695
    %v1310 = vpow.pop %v1309
    %v1311 = vsub.f32 %v1246, %v1307
    %v1312 = vmul.f32 %v1311, 1.442695
    %v1313 = vpow.pop %v1312
    %v1314 = vsub.f32 %v1255, %v1307
    %v1315 = vmul.f32 %v1314, 1.442695
    %v1316 = vpow.pop %v1315
    %v1317 = vsub.f32 %v1264, %v1307
    %v1318 = vmul.f32 %v1317, 1.442695
    %v1319 = vpow.pop %v1318
    %v1320 = vsub.f32 %v1273, %v1307
    %v1321 = vmul.f32 %v1320, 1.442695
    %v1322 = vpow.pop %v1321
    %v1323 = vsub.f32 %v1282, %v1307
    %v1324 = vmul.f32 %v1323, 1.442695
    %v1325 = vpow.pop %v1324
    %v1326 = vsub.f32 %v1291, %v1307
    %v1327 = vmul.f32 %v1326, 1.442695
    %v1328 = vpow.pop %v1327
    %v1329 = vsub.f32 %v1300, %v1307
    %v1330 = vmul.f32 %v1329, 1.442695
    %v1331 = vpow.pop %v1330
    %v1332 = vmul.f32 %v303, %v1310
    %v1333 = vadd.f32 %v1310, %v1313
    %v1334 = vmul.f32 %v438, %v1313
    %v1335 = vadd.f32 %v1332, %v1334
    %v1336 = vadd.f32 %v1333, %v1316
    %v1337 = vmul.f32 %v573, %v1316
    %v1338 = vadd.f32 %v1335, %v1337
    %v1339 = vadd.f32 %v1336, %v1319
    %v1340 = vmul.f32 %v706, %v1319
    %v1341 = vadd.f32 %v1338, %v1340
    %v1342 = vadd.f32 %v1339, %v1322
    %v1343 = vmul.f32 %v842, %v1322
    %v1344 = vadd.f32 %v1341, %v1343
    %v1345 = vadd.f32 %v1342, %v1325
    %v1346 = vmul.f32 %v977, %v1325
    %v1347 = vadd.f32 %v1344, %v1346
    %v1348 = vadd.f32 %v1345, %v1328
    %v1349 = vmul.f32 %v1112, %v1328
    %v1350 = vadd.f32 %v1347, %v1349
    %v1351 = vadd.f32 %v1348, %v1331
    %v1352 = vmul.f32 %v1219, %v1331
    %v1353 = vadd.f32 %v1350, %v1352
    %v1354 = vrcp.pop %v1351
    %v1355 = vmul.f32 %v1353, %v1354
    %v1356 = vld [vmem:[#allocation2 + $0xd0] sm:$0xff]
    %v1357 = vld [vmem:[#allocation2 + $0xe0] sm:$0xff]
    %v1358 = vld [vmem:[#allocation2 + $0xf0] sm:$0xff]
    %v1359 = vld [vmem:[#allocation2 + $0x100] sm:$0xff]
    %s1360 = scalar_lea.vmem [#allocation2], 272
    %v1361 = vld [vmem:[%s1360] ss:$8 sm:$0x3]
    %v1362 = vld [vmem:[#allocation2 + $0x120] sm:$0xff]
    %v1363 = vld [vmem:[#allocation2 + $0x130] sm:$0xff]
    %s1364 = scalar_lea.vmem [#allocation2], 320
    %v1365 = vld [vmem:[%s1364] ss:$8 sm:$0x3]
    %v1366 = vld [vmem:[#allocation2 + $0x150] sm:$0xff]
    %s1367 = scalar_lea.vmem [#allocation2], 352
    %v1368 = vld [vmem:[%s1367] ss:$8 sm:$0x3]
    %v1370 = vlaneseq
    %v1371 = vshrl.u32 %v1370, 7
    %v1372 = vsub.s32 0, %v1371
    %v1373 = vrot.slane %v1361, %v1372
    %1376 = vrot.lane.b32.xlu0 %v1355, 32
    %v1377 = vpop.permute.xlu0 %1376
    %v1378 = vsel %vm168, %v1377, 0
    %1380 = vmatprep.subr.mxu0 0.0
    %1381 = vmatpush1.msra.mxu0 %v1356
    %1382 = vmatprep.subr.mxu0 0.0
    %1383 = vmatpush1.msra.mxu0 %v1357
    %1384 = vmatprep.subr.mxu0 0.0
    %1385 = vmatpush1.msra.mxu0 %v1358
    %1386 = vmatprep.subr.mxu0 0.0
    %1387 = vmatpush1.msra.mxu0 %v1359
    %1388 = vmatprep.subr.mxu0 0.0
    %1389 = vmatpush1.msra.mxu0 0.0
    %1390 = vmatprep.subr.mxu0 0.0
    %1391 = vmatpush1.msra.mxu0 0.0
    %1392 = vmatprep.subr.mxu0 0.0
    %1393 = vmatpush1.msra.mxu0 0.0
    %1394 = vmatprep.subr.mxu0 0.0
    %1395 = vmatpush1.msra.mxu0 0.0
    %1396 = vmatprep.subr.mxu0 0.0
    %1397 = vmatpush1.msra.mxu0 0.0
    %1398 = vmatprep.subr.mxu0 0.0
    %1399 = vmatpush1.msra.mxu0 0.0
    %1400 = vmatprep.subr.mxu0 0.0
    %1401 = vmatpush1.msra.mxu0 0.0
    %1402 = vmatprep.subr.mxu0 0.0
    %1403 = vmatpush1.msra.mxu0 0.0
    %1404 = vmatprep.subr.mxu0 0.0
    %1405 = vmatpush1.msra.mxu0 0.0
    %1406 = vmatprep.subr.mxu0 0.0
    %1407 = vmatpush1.msra.mxu0 0.0
    %1408 = vmatprep.subr.mxu0 0.0
    %1409 = vmatpush1.msra.mxu0 0.0
    %1410 = vmatprep.subr.mxu0 0.0
    %1411 = vmatpush1.msra.mxu0 0.0
    %1412 = vmatprep.subr.mxu0 0.0
    %1413 = vmatpush1.msra.mxu0 0.0
    %1414 = vmatprep.subr.mxu0 0.0
    %1415 = vmatpush1.msra.mxu0 0.0
    %1416 = vmatprep.subr.mxu0 0.0
    %1417 = vmatpush1.msra.mxu0 0.0
    %1418 = vmatprep.subr.mxu0 0.0
    %1419 = vmatpush1.msra.mxu0 0.0
    %1420 = vmatprep.subr.mxu0 0.0
    %1421 = vmatpush1.msra.mxu0 0.0
    %1422 = vmatprep.subr.mxu0 0.0
    %1423 = vmatpush1.msra.mxu0 0.0
    %1424 = vmatprep.subr.mxu0 0.0
    %1425 = vmatpush1.msra.mxu0 0.0
    %1426 = vmatprep.subr.mxu0 0.0
    %1427 = vmatpush1.msra.mxu0 0.0
    %1428 = vmatprep.subr.mxu0 0.0
    %1429 = vmatpush1.msra.mxu0 0.0
    %1430 = vmatprep.subr.mxu0 0.0
    %1431 = vmatpush1.msra.mxu0 0.0
    %1432 = vmatprep.subr.mxu0 0.0
    %1433 = vmatpush1.msra.mxu0 0.0
    %1434 = vmatprep.subr.mxu0 0.0
    %1435 = vmatpush1.msra.mxu0 0.0
    %1436 = vmatprep.subr.mxu0 0.0
    %1437 = vmatpush1.msra.mxu0 0.0
    %1438 = vmatprep.subr.mxu0 0.0
    %1439 = vmatpush1.msra.mxu0 0.0
    %1440 = vmatprep.subr.mxu0 0.0
    %1441 = vmatpush1.msra.mxu0 0.0
    %1442 = vmatprep.subr.mxu0 0.0
    %1443 = vmatpush1.msra.mxu0 0.0
    %1444 = vmatprep.mubr.f32.mxu0 0.0
    %1445 = vmatmul.mubr.f32.gmra.mrb[0].mxu0 %v1378
    %v1446 = vpop.f32.mrb[0].mxu0
    %v1447 = vadd.f32 %v1373, %v1446
    %v1448 = vpop.f32.mrb[0].mxu0
    %1449 = vdwg.mxu0
    %v1450 = vmax.f32 %v1447, 0.0
    %v1452 = vlaneseq
    %v1453 = vshrl.u32 %v1452, 7
    %v1454 = vsub.s32 0, %v1453
    %v1455 = vrot.slane %v1365, %v1454
    %v1458 = vsel %vm58, %v1450, 0
    %1460 = vmatprep.subr.mxu0 0.0
    %1461 = vmatpush1.msra.mxu0 %v1362
    %1462 = vmatprep.subr.mxu0 0.0
    %1463 = vmatpush1.msra.mxu0 %v1363
    %1464 = vmatprep.subr.mxu0 0.0
    %1465 = vmatpush1.msra.mxu0 0.0
    %1466 = vmatprep.subr.mxu0 0.0
    %1467 = vmatpush1.msra.mxu0 0.0
    %1468 = vmatprep.subr.mxu0 0.0
    %1469 = vmatpush1.msra.mxu0 0.0
    %1470 = vmatprep.subr.mxu0 0.0
    %1471 = vmatpush1.msra.mxu0 0.0
    %1472 = vmatprep.subr.mxu0 0.0
    %1473 = vmatpush1.msra.mxu0 0.0
    %1474 = vmatprep.subr.mxu0 0.0
    %1475 = vmatpush1.msra.mxu0 0.0
    %1476 = vmatprep.subr.mxu0 0.0
    %1477 = vmatpush1.msra.mxu0 0.0
    %1478 = vmatprep.subr.mxu0 0.0
    %1479 = vmatpush1.msra.mxu0 0.0
    %1480 = vmatprep.subr.mxu0 0.0
    %1481 = vmatpush1.msra.mxu0 0.0
    %1482 = vmatprep.subr.mxu0 0.0
    %1483 = vmatpush1.msra.mxu0 0.0
    %1484 = vmatprep.subr.mxu0 0.0
    %1485 = vmatpush1.msra.mxu0 0.0
    %1486 = vmatprep.subr.mxu0 0.0
    %1487 = vmatpush1.msra.mxu0 0.0
    %1488 = vmatprep.subr.mxu0 0.0
    %1489 = vmatpush1.msra.mxu0 0.0
    %1490 = vmatprep.subr.mxu0 0.0
    %1491 = vmatpush1.msra.mxu0 0.0
    %1492 = vmatprep.subr.mxu0 0.0
    %1493 = vmatpush1.msra.mxu0 0.0
    %1494 = vmatprep.subr.mxu0 0.0
    %1495 = vmatpush1.msra.mxu0 0.0
    %1496 = vmatprep.subr.mxu0 0.0
    %1497 = vmatpush1.msra.mxu0 0.0
    %1498 = vmatprep.subr.mxu0 0.0
    %1499 = vmatpush1.msra.mxu0 0.0
    %1500 = vmatprep.subr.mxu0 0.0
    %1501 = vmatpush1.msra.mxu0 0.0
    %1502 = vmatprep.subr.mxu0 0.0
    %1503 = vmatpush1.msra.mxu0 0.0
    %1504 = vmatprep.subr.mxu0 0.0
    %1505 = vmatpush1.msra.mxu0 0.0
    %1506 = vmatprep.subr.mxu0 0.0
    %1507 = vmatpush1.msra.mxu0 0.0
    %1508 = vmatprep.subr.mxu0 0.0
    %1509 = vmatpush1.msra.mxu0 0.0
    %1510 = vmatprep.subr.mxu0 0.0
    %1511 = vmatpush1.msra.mxu0 0.0
    %1512 = vmatprep.subr.mxu0 0.0
    %1513 = vmatpush1.msra.mxu0 0.0
    %1514 = vmatprep.subr.mxu0 0.0
    %1515 = vmatpush1.msra.mxu0 0.0
    %1516 = vmatprep.subr.mxu0 0.0
    %1517 = vmatpush1.msra.mxu0 0.0
    %1518 = vmatprep.subr.mxu0 0.0
    %1519 = vmatpush1.msra.mxu0 0.0
    %1520 = vmatprep.subr.mxu0 0.0
    %1521 = vmatpush1.msra.mxu0 0.0
    %1522 = vmatprep.subr.mxu0 0.0
    %1523 = vmatpush1.msra.mxu0 0.0
    %1524 = vmatprep.mubr.f32.mxu0 0.0
    %1525 = vmatmul.mubr.f32.gmra.mrb[0].mxu0 %v1458
    %v1526 = vpop.f32.mrb[0].mxu0
    %v1527 = vadd.f32 %v1455, %v1526
    %v1528 = vpop.f32.mrb[0].mxu0
    %1529 = vdwg.mxu0
    %v1530 = vmax.f32 %v1527, 0.0
    %v1532 = vlaneseq
    %v1533 = vshrl.u32 %v1532, 7
    %v1534 = vsub.s32 0, %v1533
    %v1535 = vrot.slane %v1368, %v1534
    %vm1537 = vcmask 64512
    %v1539 = vsel %vm1537, %v1530, 0
    %1541 = vmatprep.subr.mxu0 0.0
    %1542 = vmatpush1.msra.mxu0 %v1366
    %1543 = vmatprep.subr.mxu0 0.0
    %1544 = vmatpush1.msra.mxu0 0.0
    %1545 = vmatprep.subr.mxu0 0.0
    %1546 = vmatpush1.msra.mxu0 0.0
    %1547 = vmatprep.subr.mxu0 0.0
    %1548 = vmatpush1.msra.mxu0 0.0
    %1549 = vmatprep.subr.mxu0 0.0
    %1550 = vmatpush1.msra.mxu0 0.0
    %1551 = vmatprep.subr.mxu0 0.0
    %1552 = vmatpush1.msra.mxu0 0.0
    %1553 = vmatprep.subr.mxu0 0.0
    %1554 = vmatpush1.msra.mxu0 0.0
    %1555 = vmatprep.subr.mxu0 0.0
    %1556 = vmatpush1.msra.mxu0 0.0
    %1557 = vmatprep.subr.mxu0 0.0
    %1558 = vmatpush1.msra.mxu0 0.0
    %1559 = vmatprep.subr.mxu0 0.0
    %1560 = vmatpush1.msra.mxu0 0.0
    %1561 = vmatprep.subr.mxu0 0.0
    %1562 = vmatpush1.msra.mxu0 0.0
    %1563 = vmatprep.subr.mxu0 0.0
    %1564 = vmatpush1.msra.mxu0 0.0
    %1565 = vmatprep.subr.mxu0 0.0
    %1566 = vmatpush1.msra.mxu0 0.0
    %1567 = vmatprep.subr.mxu0 0.0
    %1568 = vmatpush1.msra.mxu0 0.0
    %1569 = vmatprep.subr.mxu0 0.0
    %1570 = vmatpush1.msra.mxu0 0.0
    %1571 = vmatprep.subr.mxu0 0.0
    %1572 = vmatpush1.msra.mxu0 0.0
    %1573 = vmatprep.subr.mxu0 0.0
    %1574 = vmatpush1.msra.mxu0 0.0
    %1575 = vmatprep.subr.mxu0 0.0
    %1576 = vmatpush1.msra.mxu0 0.0
    %1577 = vmatprep.subr.mxu0 0.0
    %1578 = vmatpush1.msra.mxu0 0.0
    %1579 = vmatprep.subr.mxu0 0.0
    %1580 = vmatpush1.msra.mxu0 0.0
    %1581 = vmatprep.subr.mxu0 0.0
    %1582 = vmatpush1.msra.mxu0 0.0
    %1583 = vmatprep.subr.mxu0 0.0
    %1584 = vmatpush1.msra.mxu0 0.0
    %1585 = vmatprep.subr.mxu0 0.0
    %1586 = vmatpush1.msra.mxu0 0.0
    %1587 = vmatprep.subr.mxu0 0.0
    %1588 = vmatpush1.msra.mxu0 0.0
    %1589 = vmatprep.subr.mxu0 0.0
    %1590 = vmatpush1.msra.mxu0 0.0
    %1591 = vmatprep.subr.mxu0 0.0
    %1592 = vmatpush1.msra.mxu0 0.0
    %1593 = vmatprep.subr.mxu0 0.0
    %1594 = vmatpush1.msra.mxu0 0.0
    %1595 = vmatprep.subr.mxu0 0.0
    %1596 = vmatpush1.msra.mxu0 0.0
    %1597 = vmatprep.subr.mxu0 0.0
    %1598 = vmatpush1.msra.mxu0 0.0
    %1599 = vmatprep.subr.mxu0 0.0
    %1600 = vmatpush1.msra.mxu0 0.0
    %1601 = vmatprep.subr.mxu0 0.0
    %1602 = vmatpush1.msra.mxu0 0.0
    %1603 = vmatprep.subr.mxu0 0.0
    %1604 = vmatpush1.msra.mxu0 0.0
    %1605 = vmatprep.mubr.f32.mxu0 0.0
    %1606 = vmatmul.mubr.f32.gmra.mrb[0].mxu0 %v1539
    %v1607 = vpop.f32.mrb[0].mxu0
    %v1608 = vadd.f32 %v1535, %v1607
    %v1609 = vpop.f32.mrb[0].mxu0
    %1610 = vdwg.mxu0
    %vm1611 = vcmask 25600
    %1612 = vst.msk [vmem:[#allocation5] sm:$0x3] %vm1611, %v1608
    // Predicated region
    $region14: #{lstm_attention_predictor.1} parent=1 // pred_check
      _
    $region15: #{lstm_attention_predictor.1} parent=1 // pred_check_branch
      %1614 = sbr.rel (0) target = $region17
    $region16: #{lstm_attention_predictor.1} parent=1 // pred_region
      %s1616 = ssub.s32 32, 32
      %1617 = vsyncadd [#allocation4], %s1616
      %s1619 = sshll.u32 [#allocation5], 4
      %s1620 = int_to_ptr.vmem [resolvable:$true] %s1619
      %1622 = dma.vmem_to_hbm [thread:$0]  %s1620, 32, %s2, [#allocation4]
    $region17: #{lstm_attention_predictor.1} parent=1 // pred_fallthru
      _
    // Predicated region
    $region18: #{lstm_attention_predictor.1} parent=1 // pred_check
      _
    $region19: #{lstm_attention_predictor.1} parent=1 // pred_check_branch
      %1624 = sbr.rel (0) target = $region21
    $region20: #{lstm_attention_predictor.1} parent=1 // pred_region
      %1625 = dma.done [#allocation4], 32
    $region21: #{lstm_attention_predictor.1} parent=1 // pred_fallthru
      _
    %1626 = vsyncpa [#allocation3], 1
    %1627 = vsyncpa [#allocation4], 1

</llo_original>
